<compile_context>
chip_gen: v5e
topology: v5e:2x2
jax: 0.10.0
libtpu: 0.0.40
codegen_flags: <defaults>
</compile_context>

<pallas_src>
import jax
import jax.numpy as jnp
from jax.experimental import pallas as pl
from jax.experimental.pallas import tpu as pltpu

LANE = 128
NEG_SLOPE = 0.2
NUM_PROP_LAYERS = 3


def _round_up(x, m):
    return ((x + m - 1) // m) * m


def _vmem_limit_bytes():
    """~75% of physical VMEM: ~96 MiB on v5e/v6e (128 MiB), ~48 MiB on v7x (64 MiB)."""
    try:
        cap = pltpu.get_tpu_info().vmem_capacity_bytes
    except Exception:
        cap = 64 * 1024 * 1024
    return min(cap * 3 // 4, 112 * 1024 * 1024)


def _fused_fits(n_pad, feat_p, vmem_limit):
    """Conservative VMEM estimate for the fully fused kernel (assume double buffers)."""
    a_bytes = n_pad * n_pad * 2          # bf16 A_hat (resident)
    act_bytes = n_pad * feat_p * 2       # bf16 h0 / hlin scratch
    out_bytes = n_pad * feat_p * 4       # f32 emb / logits
    need = 2 * a_bytes + 3 * act_bytes + 4 * out_bytes
    return need <= int(vmem_limit * 0.8)


def _largest_divisor_tile(n_pad, cap=1024):
    for t in (1024, 512, 256, 128):
        if t <= cap and n_pad % t == 0:
            return t
    return n_pad


def _pick_row_tile(n_pad, vmem_limit):
    """Row tile for the fallback path: as large as possible, VMEM-budgeted."""
    tile = 256
    for t in (2048, 1024, 512):
        if n_pad % t == 0:
            tile = t
            break
    # 2 streamed A row-stripe buffers must stay well under the budget.
    while tile > 128 and (2 * tile * n_pad * 2) > int(vmem_limit * 0.5):
        tile //= 2
    return tile


# ----------------------------------------------------------------------------
# Kernels
# ----------------------------------------------------------------------------
def _linear_kernel(x_ref, w_ref, b_ref, o_ref):
    """o = x @ w + b (row-tiled, bf16 operands, f32 accumulate + bias)."""
    o_ref[...] = (
        jnp.dot(x_ref[...], w_ref[...], preferred_element_type=jnp.float32)
        + b_ref[...]
    ).astype(o_ref.dtype)


def _fused_gcn_kernel(a_ref, h0_ref, w_ref, b_ref, emb_ref, out_ref, hlin_ref):
    """All three propagate layers in one call; grid axis = layer index.

    A_hat (a_ref) and h0 use constant-index BlockSpecs -> DMA'd from HBM once
    and kept resident.  hlin_ref is a VMEM scratch carrying the inter-layer
    activation (lin of the next layer), so H is never re-streamed from HBM.
    """
    layer = pl.program_id(0)

    @pl.when(layer == 0)
    def _():
        hlin_ref[...] = h0_ref[...]               # X @ W1 + b1 (from the linear kernel)

    # propagate: A_hat @ H   (bf16 x bf16, f32 accumulation on the MXU)
    prop = jnp.dot(a_ref[...], hlin_ref[...], preferred_element_type=jnp.float32)
    h = jnp.where(prop > 0, prop, NEG_SLOPE * prop)          # LeakyReLU(0.2)

    # next layer's Linear (W2 / W3 / Wout depending on `layer`), bf16 MXU path.
    nxt = jnp.dot(h.astype(jnp.bfloat16), w_ref[0],
                  preferred_element_type=jnp.float32) + b_ref[0]

    hlin_ref[...] = nxt.astype(jnp.bfloat16)      # carried into the next layer
    # Only the values written on the last layer survive (outputs are resident):
    emb_ref[...] = h.astype(emb_ref.dtype)        # x_embed (LeakyReLU of last prop)
    out_ref[...] = nxt.astype(out_ref.dtype)      # logits  (h @ Wout + bout)


def _prop_mid_kernel(a_ref, h_ref, w_ref, b_ref, out_ref):
    """Fallback, middle layer: out = (LeakyReLU(A_row_stripe @ H)) @ W_next + b_next."""
    prop = jnp.dot(a_ref[...], h_ref[...], preferred_element_type=jnp.float32)
    h = jnp.where(prop > 0, prop, NEG_SLOPE * prop)
    out_ref[...] = (
        jnp.dot(h.astype(jnp.bfloat16), w_ref[...], preferred_element_type=jnp.float32)
        + b_ref[...]
    ).astype(out_ref.dtype)


def _prop_last_kernel(a_ref, h_ref, w_ref, b_ref, emb_ref, out_ref):
    """Fallback, last layer: also emits the embedding (LeakyReLU output)."""
    prop = jnp.dot(a_ref[...], h_ref[...], preferred_element_type=jnp.float32)
    h = jnp.where(prop > 0, prop, NEG_SLOPE * prop)
    emb_ref[...] = h.astype(emb_ref.dtype)
    out_ref[...] = (
        jnp.dot(h.astype(jnp.bfloat16), w_ref[...], preferred_element_type=jnp.float32)
        + b_ref[...]
    ).astype(out_ref.dtype)


# ----------------------------------------------------------------------------
# pallas_call wrappers
# ----------------------------------------------------------------------------
def linear_pallas(x, w, b, *, tm, out_dtype, vmem_limit):
    n_pad, fin = x.shape
    fout = w.shape[1]
    return pl.pallas_call(
        _linear_kernel,
        out_shape=jax.ShapeDtypeStruct((n_pad, fout), out_dtype),
        grid=(n_pad // tm,),
        in_specs=[
            pl.BlockSpec((tm, fin), lambda i: (i, 0)),
            pl.BlockSpec((fin, fout), lambda i: (0, 0)),
            pl.BlockSpec((1, fout), lambda i: (0, 0)),
        ],
        out_specs=pl.BlockSpec((tm, fout), lambda i: (i, 0)),
        compiler_params=pltpu.CompilerParams(
            dimension_semantics=("parallel",),
            vmem_limit_bytes=vmem_limit,
        ),
    )(x, w, b)


def fused_gcn_pallas(a_hat, h0, w_stack, b_stack, *, vmem_limit):
    """One pallas_call for all three propagate layers (A_hat resident in VMEM)."""
    n_pad, feat_p = h0.shape
    n_layers = w_stack.shape[0]
    emb, logits = pl.pallas_call(
        _fused_gcn_kernel,
        out_shape=(
            jax.ShapeDtypeStruct((n_pad, feat_p), jnp.float32),   # x_embed
            jax.ShapeDtypeStruct((n_pad, feat_p), jnp.float32),   # logits
        ),
        grid=(n_layers,),
        in_specs=[
            pl.BlockSpec((n_pad, n_pad), lambda l: (0, 0)),       # A_hat: resident (1 DMA)
            pl.BlockSpec((n_pad, feat_p), lambda l: (0, 0)),      # h0:    resident
            pl.BlockSpec((1, feat_p, feat_p), lambda l: (l, 0, 0)),  # per-layer W
            pl.BlockSpec((1, 1, feat_p), lambda l: (l, 0, 0)),       # per-layer b
        ],
        out_specs=(
            pl.BlockSpec((n_pad, feat_p), lambda l: (0, 0)),
            pl.BlockSpec((n_pad, feat_p), lambda l: (0, 0)),
        ),
        scratch_shapes=[pltpu.VMEM((n_pad, feat_p), jnp.bfloat16)],   # inter-layer H
        compiler_params=pltpu.CompilerParams(
            dimension_semantics=("arbitrary",),                   # layers are sequential
            vmem_limit_bytes=vmem_limit,
        ),
    )(a_hat, h0, w_stack, b_stack)
    return emb, logits


def prop_layer_pallas(a_hat, h, w, b, *, tm, want_emb, vmem_limit,
                      out_dtype=jnp.bfloat16, emb_dtype=jnp.float32):
    """Fallback per-layer propagate: H resident, A_hat streamed in (tm, N) row stripes."""
    n_pad = a_hat.shape[0]
    f_in = h.shape[1]
    f_out = w.shape[1]
    in_specs = [
        pl.BlockSpec((tm, n_pad), lambda i: (i, 0)),      # A_hat row stripe (streamed)
        pl.BlockSpec((n_pad, f_in), lambda i: (0, 0)),    # H fully resident
        pl.BlockSpec((f_in, f_out), lambda i: (0, 0)),    # next-layer W (bf16)
        pl.BlockSpec((1, f_out), lambda i: (0, 0)),       # next-layer b (f32)
    ]
    if want_emb:
        out_shape = (jax.ShapeDtypeStruct((n_pad, f_in), emb_dtype),
                     jax.ShapeDtypeStruct((n_pad, f_out), out_dtype))
        out_specs = (pl.BlockSpec((tm, f_in), lambda i: (i, 0)),
                     pl.BlockSpec((tm, f_out), lambda i: (i, 0)))
        kernel = _prop_last_kernel
    else:
        out_shape = jax.ShapeDtypeStruct((n_pad, f_out), out_dtype)
        out_specs = pl.BlockSpec((tm, f_out), lambda i: (i, 0))
        kernel = _prop_mid_kernel
    return pl.pallas_call(
        kernel,
        out_shape=out_shape,
        grid=(n_pad // tm,),
        in_specs=in_specs,
        out_specs=out_specs,
        compiler_params=pltpu.CompilerParams(
            dimension_semantics=("parallel",),                # rows shard across TCs
            vmem_limit_bytes=vmem_limit,
        ),
    )(a_hat, h, w, b)


# ----------------------------------------------------------------------------
# Glue: dense normalized adjacency (this module's GCNConv semantics), bf16
# ----------------------------------------------------------------------------
def build_normalized_adjacency(edge_index, num_nodes, n_pad):
    self_loops = jnp.stack([jnp.arange(num_nodes), jnp.arange(num_nodes)])
    ei = jnp.concatenate([edge_index, self_loops], axis=1)
    row, col = ei[0], ei[1]                              # row = source j, col = target i
    deg = jnp.zeros((num_nodes,), jnp.float32).at[col].add(1.0)
    deg_inv_sqrt = deg ** (-0.5)                         # deg >= 1 (self loops)
    norm = (deg_inv_sqrt[row] * deg_inv_sqrt[col]).astype(jnp.bfloat16)
    # out[col] += norm * x[row]  =>  A_hat[col, row] += norm ; built directly in bf16
    a_hat = jnp.zeros((n_pad, n_pad), jnp.bfloat16).at[col, row].add(norm)
    return a_hat


def _pad_w(w, fi, fo):
    out = jnp.zeros((fi, fo), jnp.float32).at[: w.shape[0], : w.shape[1]].set(w)
    return out.astype(jnp.bfloat16)


def _pad_b(b, fo):
    return jnp.zeros((1, fo), jnp.float32).at[:, : b.shape[1]].set(b)


def init_params(key, input_dim, hidden_dim, embedding_dim, num_classes):
    """Weights stored pre-transposed [in, out]; bias [1, out] (torch.nn.Linear init)."""
    ks = jax.random.split(key, 8)

    def lin(kw, kb, fan_in, fan_out):
        bound = 1.0 / jnp.sqrt(fan_in)
        w = jax.random.uniform(kw, (fan_in, fan_out), jnp.float32, -bound, bound)
        b = jax.random.uniform(kb, (1, fan_out), jnp.float32, -bound, bound)
        return w, b

    w1, b1 = lin(ks[0], ks[1], input_dim, hidden_dim)
    w2, b2 = lin(ks[2], ks[3], hidden_dim, hidden_dim)
    w3, b3 = lin(ks[4], ks[5], hidden_dim, embedding_dim)
    wo, bo = lin(ks[6], ks[7], embedding_dim, num_classes)
    return dict(w1=w1, b1=b1, w2=w2, b2=b2, w3=w3, b3=b3, wo=wo, bo=bo)


# ----------------------------------------------------------------------------
# Forward pass (mirrors GCN.forward)
# ----------------------------------------------------------------------------
def gcn_forward(x, edge_index, node_label, node_index, params, *, force_fallback=False):
    del node_label  # unused in the reference forward pass
    n, fin = x.shape
    hidden_dim = params["w1"].shape[1]
    embedding_dim = params["w3"].shape[1]
    num_classes = params["wo"].shape[1]

    fin_p = _round_up(fin, LANE)
    hid_p = _round_up(hidden_dim, LANE)
    emb_p = _round_up(embedding_dim, LANE)
    cls_p = _round_up(num_classes, LANE)

    vmem_limit = _vmem_limit_bytes()
    feat_p = max(hid_p, emb_p, cls_p)          # common padded feature width (fused path)
    n_pad_fused = _round_up(n, LANE)
    use_fused = (not force_fallback) and _fused_fits(n_pad_fused, feat_p, vmem_limit)

    if use_fused:
        n_pad = n_pad_fused                    # pad only to 128: minimise N^2 padding waste
        tile = _largest_divisor_tile(n_pad)
    else:
        n_pad = _round_up(n, 256)              # pad N to the row tile granularity
        tile = _pick_row_tile(n_pad, vmem_limit)

    a_hat = build_normalized_adjacency(edge_index, n, n_pad)          # bf16, one pass
    x_p = jnp.zeros((n_pad, fin_p), jnp.bfloat16).at[:n, :fin].set(x.astype(jnp.bfloat16))

    if use_fused:
        w1 = _pad_w(params["w1"], fin_p, feat_p)
        b1 = _pad_b(params["b1"], feat_p)
        w_stack = jnp.stack([_pad_w(params["w2"], feat_p, feat_p),
                             _pad_w(params["w3"], feat_p, feat_p),
                             _pad_w(params["wo"], feat_p, feat_p)])   # (3, F, F) bf16
        b_stack = jnp.stack([_pad_b(params["b2"], feat_p),
                             _pad_b(params["b3"], feat_p),
                             _pad_b(params["bo"], feat_p)])           # (3, 1, F) f32

        h0 = linear_pallas(x_p, w1, b1, tm=tile, out_dtype=jnp.bfloat16,
                           vmem_limit=vmem_limit)                     # conv_first.lin
        emb_full, logits_full = fused_gcn_pallas(a_hat, h0, w_stack, b_stack,
                                                 vmem_limit=vmem_limit)
    else:
        w1, b1 = _pad_w(params["w1"], fin_p, hid_p), _pad_b(params["b1"], hid_p)
        w2, b2 = _pad_w(params["w2"], hid_p, hid_p), _pad_b(params["b2"], hid_p)
        w3, b3 = _pad_w(params["w3"], hid_p, emb_p), _pad_b(params["b3"], emb_p)
        wo, bo = _pad_w(params["wo"], emb_p, cls_p), _pad_b(params["bo"], cls_p)

        h0 = linear_pallas(x_p, w1, b1, tm=tile, out_dtype=jnp.bfloat16,
                           vmem_limit=vmem_limit)                     # conv_first.lin
        h1 = prop_layer_pallas(a_hat, h0, w2, b2, tm=tile, want_emb=False,
                               vmem_limit=vmem_limit)                 # prop + act2 + conv_block.lin
        h2 = prop_layer_pallas(a_hat, h1, w3, b3, tm=tile, want_emb=False,
                               vmem_limit=vmem_limit)                 # prop + act2 + conv_last.lin
        emb_full, logits_full = prop_layer_pallas(
            a_hat, h2, wo, bo, tm=tile, want_emb=True,
            out_dtype=jnp.float32, vmem_limit=vmem_limit)             # prop + act2 + out head

    x_embed = emb_full[:n, :embedding_dim].astype(jnp.float32)
    logits = logits_full[:n, :num_classes].astype(jnp.float32)
    node_output = logits[node_index]
    ypred = jnp.argmax(logits, axis=1)
    y_nodepred = ypred[node_index]
    return x_embed, node_output, ypred, y_nodepred


gcn_forward_jit = jax.jit(gcn_forward, static_argnames=("force_fallback",))


if __name__ == "__main__":
    key = jax.random.PRNGKey(0)

    # Small shapes consistent with the module.
    N = 300
    input_dim = 16
    hidden_dim = 32
    embedding_dim = 16
    num_classes = 3

    k_x, k_p = jax.random.split(key)
    x = jax.random.normal(k_x, (N, input_dim), jnp.float32)

    # Deterministic small graph: ring with edges in both directions.
    src = jnp.arange(N)
    dst = (src + 1) % N
    edge_index = jnp.concatenate(
        [jnp.stack([src, dst]), jnp.stack([dst, src])], axis=1
    ).astype(jnp.int32)                                   # [2, 2N]

    node_index = jnp.array([0, 2, 5, 100], jnp.int32)
    node_label = jnp.zeros((1, node_index.shape[0], num_classes), jnp.float32)  # unused

    params = init_params(k_p, input_dim, hidden_dim, embedding_dim, num_classes)

    # Main path: fully fused kernel (A_hat resident in VMEM).
    x_embed, node_output, ypred, y_nodepred = gcn_forward_jit(
        x, edge_index, node_label, node_index, params
    )
    jax.block_until_ready((x_embed, node_output, ypred, y_nodepred))

    assert x_embed.shape == (N, embedding_dim)
    assert node_output.shape == (node_index.shape[0], num_classes)
    assert ypred.shape == (N,)
    assert y_nodepred.shape == (node_index.shape[0],)
    assert bool(jnp.all(jnp.isfinite(node_output)))

    # Also exercise the large-graph fallback path (per-layer, H resident) and
    # check it agrees with the fused path (same math, bf16 rounding apart).
    x_embed_fb, node_output_fb, _, _ = gcn_forward_jit(
        x, edge_index, node_label, node_index, params, force_fallback=True
    )
    jax.block_until_ready((x_embed_fb, node_output_fb))
    tol = 5e-2 * (1.0 + float(jnp.max(jnp.abs(node_output))))
    assert float(jnp.max(jnp.abs(node_output - node_output_fb))) < tol
    assert float(jnp.max(jnp.abs(x_embed - x_embed_fb))) < tol

    print("KERNEL_OK")
</pallas_src>

<mosaic_0001>
module attributes {stable_mosaic.version = 11 : i64} {
  func.func @_linear_kernel(%arg0: i32, %arg1: memref<128x128xbf16, #tpu.memory_space<vmem>>, %arg2: memref<128x128xbf16, #tpu.memory_space<vmem>>, %arg3: memref<1x128xf32, #tpu.memory_space<vmem>>, %arg4: memref<128x128xbf16, #tpu.memory_space<vmem>>) attributes {dimension_semantics = [#tpu.dimension_semantics<parallel>], iteration_bounds = array<i64: 3>, scalar_prefetch = 0 : i64, scratch_operands = 0 : i64, tpu.core_type = #tpu.core_type<tc>, window_params = [{transform_indices = @transform_0, window_bounds = array<i64: 128, 128>}, {pipeline_mode = #tpu.pipeline_mode<synchronous>, transform_indices = @transform_1, window_bounds = array<i64: 128, 128>}, {pipeline_mode = #tpu.pipeline_mode<synchronous>, transform_indices = @transform_2, window_bounds = array<i64: 1, 128>}, {transform_indices = @transform_3, window_bounds = array<i64: 128, 128>}]} {
    %c0 = arith.constant 0 : index
    %c0_0 = arith.constant 0 : index
    %0 = vector.load %arg1[%c0, %c0_0] : memref<128x128xbf16, #tpu.memory_space<vmem>>, vector<128x128xbf16>
    %c0_1 = arith.constant 0 : index
    %c0_2 = arith.constant 0 : index
    %1 = vector.load %arg2[%c0_1, %c0_2] : memref<128x128xbf16, #tpu.memory_space<vmem>>, vector<128x128xbf16>
    %cst = arith.constant dense<0.000000e+00> : vector<128x128xf32>
    %2 = tpu.matmul %0, %1, %cst {dimension_numbers = #tpu.dot_dimension_numbers<[1], [0], [0], [1], [0, 0, 1, 1], [], []>} : vector<128x128xbf16>, vector<128x128xbf16>, vector<128x128xf32> -> vector<128x128xf32>
    %c0_3 = arith.constant 0 : index
    %c0_4 = arith.constant 0 : index
    %3 = vector.load %arg3[%c0_3, %c0_4] : memref<1x128xf32, #tpu.memory_space<vmem>>, vector<1x128xf32>
    %4 = vector.broadcast %3 : vector<1x128xf32> to vector<128x128xf32>
    %5 = arith.addf %2, %4 : vector<128x128xf32>
    %6 = arith.truncf %5 : vector<128x128xf32> to vector<128x128xbf16>
    %c0_5 = arith.constant 0 : index
    %c0_6 = arith.constant 0 : index
    %7 = vector.load %arg4[%c0_5, %c0_6] : memref<128x128xbf16, #tpu.memory_space<vmem>>, vector<128x128xbf16>
    tpu.vector_store %arg4[%c0_5, %c0_6], %6 {strides = array<i32>} : memref<128x128xbf16, #tpu.memory_space<vmem>>, vector<128x128xbf16>,
    return
  }
  func.func @transform_0(%arg0: i32) -> (i32, i32) {
    %c0_i32 = arith.constant 0 : i32
    %c0_i32_0 = arith.constant 0 : i32
    return %arg0, %c0_i32 : i32, i32
  }
  func.func @transform_1(%arg0: i32) -> (i32, i32) {
    %c0_i32 = arith.constant 0 : i32
    %c0_i32_0 = arith.constant 0 : i32
    %c0_i32_1 = arith.constant 0 : i32
    return %c0_i32, %c0_i32_0 : i32, i32
  }
  func.func @transform_2(%arg0: i32) -> (i32, i32) {
    %c0_i32 = arith.constant 0 : i32
    %c0_i32_0 = arith.constant 0 : i32
    %c0_i32_1 = arith.constant 0 : i32
    return %c0_i32, %c0_i32_0 : i32, i32
  }
  func.func @transform_3(%arg0: i32) -> (i32, i32) {
    %c0_i32 = arith.constant 0 : i32
    %c0_i32_0 = arith.constant 0 : i32
    return %arg0, %c0_i32 : i32, i32
  }
}

module attributes {stable_mosaic.version = 11 : i64} {
  func.func @_fused_gcn_kernel(%arg0: i32, %arg1: memref<384x384xbf16, #tpu.memory_space<vmem>>, %arg2: memref<384x128xbf16, #tpu.memory_space<vmem>>, %arg3: memref<1x128x128xbf16, #tpu.memory_space<vmem>>, %arg4: memref<1x1x128xf32, #tpu.memory_space<vmem>>, %arg5: memref<384x128xf32, #tpu.memory_space<vmem>>, %arg6: memref<384x128xf32, #tpu.memory_space<vmem>>, %arg7: memref<384x128xbf16, #tpu.memory_space<vmem>>) attributes {dimension_semantics = [#tpu.dimension_semantics<arbitrary>], iteration_bounds = array<i64: 3>, scalar_prefetch = 0 : i64, scratch_operands = 1 : i64, tpu.core_type = #tpu.core_type<tc>, window_params = [{pipeline_mode = #tpu.pipeline_mode<synchronous>, transform_indices = @transform_0, window_bounds = array<i64: 384, 384>}, {pipeline_mode = #tpu.pipeline_mode<synchronous>, transform_indices = @transform_1, window_bounds = array<i64: 384, 128>}, {transform_indices = @transform_2, window_bounds = array<i64: 1, 128, 128>}, {transform_indices = @transform_3, window_bounds = array<i64: 1, 1, 128>}, {pipeline_mode = #tpu.pipeline_mode<synchronous>, transform_indices = @transform_4, window_bounds = array<i64: 384, 128>}, {pipeline_mode = #tpu.pipeline_mode<synchronous>, transform_indices = @transform_5, window_bounds = array<i64: 384, 128>}]} {
    %c0_i32 = arith.constant 0 : i32
    %0 = arith.cmpi eq, %arg0, %c0_i32 : i32
    %1 = arith.extui %0 : i1 to i32
    %c0_i32_0 = arith.constant 0 : i32
    %2 = arith.cmpi ne, %1, %c0_i32_0 : i32
    scf.if %2 {
      %c0_19 = arith.constant 0 : index
      %c0_20 = arith.constant 0 : index
      %23 = vector.load %arg2[%c0_19, %c0_20] : memref<384x128xbf16, #tpu.memory_space<vmem>>, vector<384x128xbf16>
      %c0_21 = arith.constant 0 : index
      %c0_22 = arith.constant 0 : index
      %24 = vector.load %arg7[%c0_21, %c0_22] : memref<384x128xbf16, #tpu.memory_space<vmem>>, vector<384x128xbf16>
      tpu.vector_store %arg7[%c0_21, %c0_22], %23 {strides = array<i32>} : memref<384x128xbf16, #tpu.memory_space<vmem>>, vector<384x128xbf16>,
    } else {
    }
    %c0 = arith.constant 0 : index
    %c0_1 = arith.constant 0 : index
    %3 = vector.load %arg1[%c0, %c0_1] : memref<384x384xbf16, #tpu.memory_space<vmem>>, vector<384x384xbf16>
    %c0_2 = arith.constant 0 : index
    %c0_3 = arith.constant 0 : index
    %4 = vector.load %arg7[%c0_2, %c0_3] : memref<384x128xbf16, #tpu.memory_space<vmem>>, vector<384x128xbf16>
    %cst = arith.constant dense<0.000000e+00> : vector<384x128xf32>
    %5 = tpu.matmul %3, %4, %cst {dimension_numbers = #tpu.dot_dimension_numbers<[1], [0], [0], [1], [0, 0, 1, 1], [], []>} : vector<384x384xbf16>, vector<384x128xbf16>, vector<384x128xf32> -> vector<384x128xf32>
    %cst_4 = arith.constant 0.000000e+00 : f32
    %6 = vector.broadcast %cst_4 : f32 to vector<384x128xf32>
    %7 = arith.cmpf ogt, %5, %6 : vector<384x128xf32>
    %cst_5 = arith.constant 2.000000e-01 : f32
    %8 = vector.broadcast %cst_5 : f32 to vector<384x128xf32>
    %9 = arith.mulf %8, %5 : vector<384x128xf32>
    %10 = arith.select %7, %5, %9 : vector<384x128xi1>, vector<384x128xf32>
    %11 = arith.truncf %10 : vector<384x128xf32> to vector<384x128xbf16>
    %c0_6 = arith.constant 0 : index
    %c0_7 = arith.constant 0 : index
    %c0_8 = arith.constant 0 : index
    %12 = vector.load %arg3[%c0_6, %c0_7, %c0_8] : memref<1x128x128xbf16, #tpu.memory_space<vmem>>, vector<1x128x128xbf16>
    %13 = vector.shape_cast %12 : vector<1x128x128xbf16> to vector<128x128xbf16>
    %cst_9 = arith.constant dense<0.000000e+00> : vector<384x128xf32>
    %14 = tpu.matmul %11, %13, %cst_9 {dimension_numbers = #tpu.dot_dimension_numbers<[1], [0], [0], [1], [0, 0, 1, 1], [], []>} : vector<384x128xbf16>, vector<128x128xbf16>, vector<384x128xf32> -> vector<384x128xf32>
    %c0_10 = arith.constant 0 : index
    %c0_11 = arith.constant 0 : index
    %c0_12 = arith.constant 0 : index
    %15 = vector.load %arg4[%c0_10, %c0_11, %c0_12] : memref<1x1x128xf32, #tpu.memory_space<vmem>>, vector<1x1x128xf32>
    %16 = vector.shape_cast %15 : vector<1x1x128xf32> to vector<1x128xf32>
    %17 = vector.broadcast %16 : vector<1x128xf32> to vector<384x128xf32>
    %18 = arith.addf %14, %17 : vector<384x128xf32>
    %19 = arith.truncf %18 : vector<384x128xf32> to vector<384x128xbf16>
    %c0_13 = arith.constant 0 : index
    %c0_14 = arith.constant 0 : index
    %20 = vector.load %arg7[%c0_13, %c0_14] : memref<384x128xbf16, #tpu.memory_space<vmem>>, vector<384x128xbf16>
    tpu.vector_store %arg7[%c0_13, %c0_14], %19 {strides = array<i32>} : memref<384x128xbf16, #tpu.memory_space<vmem>>, vector<384x128xbf16>,
    %c0_15 = arith.constant 0 : index
    %c0_16 = arith.constant 0 : index
    %21 = vector.load %arg5[%c0_15, %c0_16] : memref<384x128xf32, #tpu.memory_space<vmem>>, vector<384x128xf32>
    tpu.vector_store %arg5[%c0_15, %c0_16], %10 {strides = array<i32>} : memref<384x128xf32, #tpu.memory_space<vmem>>, vector<384x128xf32>,
    %c0_17 = arith.constant 0 : index
    %c0_18 = arith.constant 0 : index
    %22 = vector.load %arg6[%c0_17, %c0_18] : memref<384x128xf32, #tpu.memory_space<vmem>>, vector<384x128xf32>
    tpu.vector_store %arg6[%c0_17, %c0_18], %18 {strides = array<i32>} : memref<384x128xf32, #tpu.memory_space<vmem>>, vector<384x128xf32>,
    return
  }
  func.func @transform_0(%arg0: i32) -> (i32, i32) {
    %c0_i32 = arith.constant 0 : i32
    %c0_i32_0 = arith.constant 0 : i32
    %c0_i32_1 = arith.constant 0 : i32
    return %c0_i32, %c0_i32_0 : i32, i32
  }
  func.func @transform_1(%arg0: i32) -> (i32, i32) {
    %c0_i32 = arith.constant 0 : i32
    %c0_i32_0 = arith.constant 0 : i32
    %c0_i32_1 = arith.constant 0 : i32
    return %c0_i32, %c0_i32_0 : i32, i32
  }
  func.func @transform_2(%arg0: i32) -> (i32, i32, i32) {
    %c0_i32 = arith.constant 0 : i32
    %c0_i32_0 = arith.constant 0 : i32
    %c0_i32_1 = arith.constant 0 : i32
    return %arg0, %c0_i32, %c0_i32_0 : i32, i32, i32
  }
  func.func @transform_3(%arg0: i32) -> (i32, i32, i32) {
    %c0_i32 = arith.constant 0 : i32
    %c0_i32_0 = arith.constant 0 : i32
    %c0_i32_1 = arith.constant 0 : i32
    return %arg0, %c0_i32, %c0_i32_0 : i32, i32, i32
  }
  func.func @transform_4(%arg0: i32) -> (i32, i32) {
    %c0_i32 = arith.constant 0 : i32
    %c0_i32_0 = arith.constant 0 : i32
    %c0_i32_1 = arith.constant 0 : i32
    return %c0_i32, %c0_i32_0 : i32, i32
  }
  func.func @transform_5(%arg0: i32) -> (i32, i32) {
    %c0_i32 = arith.constant 0 : i32
    %c0_i32_0 = arith.constant 0 : i32
    %c0_i32_1 = arith.constant 0 : i32
    return %c0_i32, %c0_i32_0 : i32, i32
  }
}

</mosaic_0001>

<llo_original>
// kernel: gcn_forward.2
$region0: #{gcn_forward.2}
  #allocation0 [shape = 'u32[]', space=smem, size = 0x4, offset = 0x4, fixed_abs, tag = 'smem constant byte address 0x4 - core index']
  #allocation1 [shape = 'u32[72,128]{1,0:T(1,128)}', space=vmem, size = 0x9000, scoped, tag = 'internal scratch']
  %s0 = inlined_call_operand.vmem [shape: bf16[384,128], index: 0, kind: input, shape index: {}]
  %s1 = inlined_call_operand.vmem [shape: bf16[128,128], index: 1, kind: input, shape index: {}]
  %s2 = inlined_call_operand.vmem [shape: f32[1,128], index: 2, kind: input, shape index: {}]
  %s3 = inlined_call_operand.vmem [shape: bf16[384,128], index: 3, kind: output, shape index: {}]
  %s4 = sld [smem:[#allocation0]]
  $region45: #{gcn_forward.2} parent=0
    _
  %s6 = ssub.s32 1, %s4
  %s7 = scalar_select 0, %s6, %s4
  loop: start=0, step=1, limit=5
  $region2: #{gcn_forward.2} parent=0 // loop_pre_header
    _
  $region3: #{gcn_forward.2} parent=0 // loop_header
    %s9 = sphi 0, %s13
    %p10 = scmp.ge.s32.totalorder %s9, 5
    %s19 = sphi 0, %s21
    %s22 = sphi 0, %s19
    %s23 = sphi 0, %s22
    %s39 = sphi 0, %s23
    %s43 = sphi 0, %s43
    %s45 = sphi 0, %s43
    %s46 = sphi 0, %s45
    %s60 = sphi 0, %s46
    %s64 = sphi 0, %s64
    %s66 = sphi 0, %s64
    %s67 = sphi 0, %s66
    %s81 = sphi 0, %s67
    %s87 = sphi 0, %s89
    %s90 = sphi 0, %s87
    %s91 = sphi 0, %s90
    %s107 = sphi 0, %s91
  $region4: #{gcn_forward.2} parent=0 // loop_header_branch
    %12 = sbr.rel (%p10) target = $region8
  $region5: #{gcn_forward.2} parent=0 // loop_body
    %s14 = ssub.s32 %s9, 1
    %s15 = ssub.s32 %s9, 2
    %s16 = sadd.s32 %s9, 1
    %s17 = ssub.s32 %s9, %s16
    %p18 = scmp.eq.s32.totalorder %s17, 0
    %s20 = sadd.s32 %s19, 1
    %s21 = scalar_select %p18, %s19, %s20
    %p24 = pneg %p18
    %p25 = scmp.eq.s32.totalorder %s9, 2
    %p26 = por %p24, %p25
    %p27 = scmp.ne.s32.totalorder %s19, %s22
    %p28 = scmp.eq.s32.totalorder %s9, 0
    %p29 = por %p27, %p28
    %p30 = scmp.ne.s32.totalorder %s19, %s22
    %p31 = scmp.eq.s32.totalorder %s14, 2
    %p32 = por %p30, %p31
    %p33 = scmp.ne.s32.totalorder %s22, %s23
    %p34 = scmp.eq.s32.totalorder %s14, 0
    %p35 = por %p33, %p34
    %p36 = scmp.ne.s32.totalorder %s22, %s23
    %p37 = scmp.eq.s32.totalorder %s15, 2
    %p38 = por %p36, %p37
    %p40 = scmp.ne.s32.totalorder %s23, %s39
    %p41 = scmp.eq.s32.totalorder %s15, 0
    %p42 = por %p40, %p41
    %s44 = sadd.s32 %s43, 1
    %p47 = scmp.eq.s32.totalorder %s9, 2
    %p48 = scmp.ne.s32.totalorder %s43, %s45
    %p49 = scmp.eq.s32.totalorder %s9, 0
    %p50 = por %p48, %p49
    %p51 = scmp.ne.s32.totalorder %s43, %s45
    %p52 = scmp.eq.s32.totalorder %s14, 2
    %p53 = por %p51, %p52
    %p54 = scmp.ne.s32.totalorder %s45, %s46
    %p55 = scmp.eq.s32.totalorder %s14, 0
    %p56 = por %p54, %p55
    %p57 = scmp.ne.s32.totalorder %s45, %s46
    %p58 = scmp.eq.s32.totalorder %s15, 2
    %p59 = por %p57, %p58
    %p61 = scmp.ne.s32.totalorder %s46, %s60
    %p62 = scmp.eq.s32.totalorder %s15, 0
    %p63 = por %p61, %p62
    %s65 = sadd.s32 %s64, 1
    %p68 = scmp.eq.s32.totalorder %s9, 2
    %p69 = scmp.ne.s32.totalorder %s64, %s66
    %p70 = scmp.eq.s32.totalorder %s9, 0
    %p71 = por %p69, %p70
    %p72 = scmp.ne.s32.totalorder %s64, %s66
    %p73 = scmp.eq.s32.totalorder %s14, 2
    %p74 = por %p72, %p73
    %p75 = scmp.ne.s32.totalorder %s66, %s67
    %p76 = scmp.eq.s32.totalorder %s14, 0
    %p77 = por %p75, %p76
    %p78 = scmp.ne.s32.totalorder %s66, %s67
    %p79 = scmp.eq.s32.totalorder %s15, 2
    %p80 = por %p78, %p79
    %p82 = scmp.ne.s32.totalorder %s67, %s81
    %p83 = scmp.eq.s32.totalorder %s15, 0
    %p84 = por %p82, %p83
    %s85 = ssub.s32 %s9, %s16
    %p86 = scmp.eq.s32.totalorder %s85, 0
    %s88 = sadd.s32 %s87, 1
    %s89 = scalar_select %p86, %s87, %s88
    %p92 = pneg %p86
    %p93 = scmp.eq.s32.totalorder %s9, 2
    %p94 = por %p92, %p93
    %p95 = scmp.ne.s32.totalorder %s87, %s90
    %p96 = scmp.eq.s32.totalorder %s9, 0
    %p97 = por %p95, %p96
    %p98 = scmp.ne.s32.totalorder %s87, %s90
    %p99 = scmp.eq.s32.totalorder %s14, 2
    %p100 = por %p98, %p99
    %p101 = scmp.ne.s32.totalorder %s90, %s91
    %p102 = scmp.eq.s32.totalorder %s14, 0
    %p103 = por %p101, %p102
    %p104 = scmp.ne.s32.totalorder %s90, %s91
    %p105 = scmp.eq.s32.totalorder %s15, 2
    %p106 = por %p104, %p105
    %p108 = scmp.ne.s32.totalorder %s91, %s107
    %p109 = scmp.eq.s32.totalorder %s15, 0
    %p110 = por %p108, %p109
    %p111 = scmp.le.s32.totalorder 1, %s9
    %p112 = scmp.lt.s32.totalorder %s9, 4
    %p113 = pnand %p111, %p112
    %p114 = pneg %p113
    // Predicated region
    $region9: #{gcn_forward.2} parent=5 // pred_check
      _
    $region10: #{gcn_forward.2} parent=5 // pred_check_branch
      %116 = sbr.rel (%p113) target = $region12
    $region11: #{gcn_forward.2} parent=5 // pred_region
      %s117 = ssub.s32 %s9, 1
      // Predicated region
      $region13: #{gcn_forward.2} parent=11 // pred_check
        %p118 = pneg %p56
      $region14: #{gcn_forward.2} parent=11 // pred_check_branch
        %120 = sbr.rel (%p118) target = $region16
      $region15: #{gcn_forward.2} parent=11 // pred_region
        _
      $region16: #{gcn_forward.2} parent=11 // pred_fallthru
        _
      // Predicated region
      $region17: #{gcn_forward.2} parent=11 // pred_check
        %p121 = pneg %p77
      $region18: #{gcn_forward.2} parent=11 // pred_check_branch
        %123 = sbr.rel (%p121) target = $region20
      $region19: #{gcn_forward.2} parent=11 // pred_region
        _
      $region20: #{gcn_forward.2} parent=11 // pred_fallthru
        _
    $region12: #{gcn_forward.2} parent=5 // pred_fallthru
      _
    %p124 = scmp.lt.s32.totalorder %s9, 3
    // Predicated region
    $region21: #{gcn_forward.2} parent=5 // pred_check
      %p125 = pneg %p124
    $region22: #{gcn_forward.2} parent=5 // pred_check_branch
      %127 = sbr.rel (%p125) target = $region24
    $region23: #{gcn_forward.2} parent=5 // pred_region
      // Predicated region
      $region25: #{gcn_forward.2} parent=23 // pred_check
        %p128 = pneg %p29
      $region26: #{gcn_forward.2} parent=23 // pred_check_branch
        %130 = sbr.rel (%p128) target = $region28
      $region27: #{gcn_forward.2} parent=23 // pred_region
        %s131 = smul.u32 16, %s9
        %p132 = scmp.lt.s32.totalorder %s131, 47
        %s133 = scalar_select %p132, %s131, 47
        %s134 = smul.addr %s133, 4
        %s135 = scalar_lea.vmem %s0, %s134
        %s136 = smul.u32 16, %s9
      $region28: #{gcn_forward.2} parent=23 // pred_fallthru
        _
    $region24: #{gcn_forward.2} parent=5 // pred_fallthru
      _
    %p137 = scmp.le.s32.totalorder 1, %s9
    %p138 = scmp.lt.s32.totalorder %s9, 4
    %p139 = pnand %p137, %p138
    %p140 = pneg %p139
    // Predicated region
    $region29: #{gcn_forward.2} parent=5 // pred_check
      _
    $region30: #{gcn_forward.2} parent=5 // pred_check_branch
      %142 = sbr.rel (%p139) target = $region32
    $region31: #{gcn_forward.2} parent=5 // pred_region
      %s143 = ssub.s32 %s9, 1
      %s144 = smul.u32 16, %s14
      %p145 = scmp.lt.s32.totalorder %s144, 47
      %s146 = scalar_select %p145, %s144, 47
      %s147 = smul.addr %s146, 4
      %s148 = scalar_lea.vmem %s0, %s147
      %p149 = pneg %p35
      %p150 = pneg %p32
      %p151 = pneg %p56
      %p152 = pneg %p53
      %p153 = pneg %p77
      %p154 = pneg %p74
      %p155 = pneg %p103
      %p156 = pneg %p100
      %s157 = smul.u32 16, %s14
      %p158 = scmp.lt.s32.totalorder %s157, 47
      %s159 = scalar_select %p158, %s157, 47
      %s160 = smul.addr %s159, 4
      %s161 = scalar_lea.vmem %s3, %s160
      %s162 = smul.u32 16, %s14
      %p163 = scmp.lt.s32.totalorder %s162, 47
      %s164 = scalar_select %p163, %s162, 47
      %s165 = smul.addr %s164, 4
      %s166 = scalar_lea.vmem %s0, %s165
      %s167 = smul.u32 16, %s14
      %s168 = smul.u32 16, %s14
      %p169 = scmp.lt.s32.totalorder %s168, 47
      %s170 = scalar_select %p169, %s168, 47
      %s171 = smul.addr %s170, 4
      %s172 = scalar_lea.vmem %s3, %s171
      %s173 = smul.u32 16, %s14
      %v174 = vld [vmem:[%s166] sm:$0xf]
      %v175 = vld [vmem:[%s166 + $0x4] sm:$0xf]
      %v176 = vld [vmem:[%s166 + $0x8] sm:$0xf]
      %v177 = vld [vmem:[%s166 + $0xc] sm:$0xf]
      %v178 = vld [vmem:[%s166 + $0x10] sm:$0xf]
      %v179 = vld [vmem:[%s166 + $0x14] sm:$0xf]
      %v180 = vld [vmem:[%s166 + $0x18] sm:$0xf]
      %v181 = vld [vmem:[%s166 + $0x1c] sm:$0xf]
      %v182 = vld [vmem:[%s166 + $0x20] sm:$0xf]
      %v183 = vld [vmem:[%s166 + $0x24] sm:$0xf]
      %v184 = vld [vmem:[%s166 + $0x28] sm:$0xf]
      %v185 = vld [vmem:[%s166 + $0x2c] sm:$0xf]
      %v186 = vld [vmem:[%s166 + $0x30] sm:$0xf]
      %v187 = vld [vmem:[%s166 + $0x34] sm:$0xf]
      %v188 = vld [vmem:[%s166 + $0x38] sm:$0xf]
      %v189 = vld [vmem:[%s166 + $0x3c] sm:$0xf]
      %v190 = vld [vmem:[%s1] sm:$0xf]
      %v191 = vld [vmem:[%s1 + $0x4] sm:$0xf]
      %v192 = vld [vmem:[%s1 + $0x8] sm:$0xf]
      %v193 = vld [vmem:[%s1 + $0xc] sm:$0xf]
      %v194 = vld [vmem:[%s1 + $0x10] sm:$0xf]
      %v195 = vld [vmem:[%s1 + $0x14] sm:$0xf]
      %v196 = vld [vmem:[%s1 + $0x18] sm:$0xf]
      %v197 = vld [vmem:[%s1 + $0x1c] sm:$0xf]
      %v198 = vld [vmem:[%s1 + $0x20] sm:$0xf]
      %v199 = vld [vmem:[%s1 + $0x24] sm:$0xf]
      %v200 = vld [vmem:[%s1 + $0x28] sm:$0xf]
      %v201 = vld [vmem:[%s1 + $0x2c] sm:$0xf]
      %v202 = vld [vmem:[%s1 + $0x30] sm:$0xf]
      %v203 = vld [vmem:[%s1 + $0x34] sm:$0xf]
      %v204 = vld [vmem:[%s1 + $0x38] sm:$0xf]
      %v205 = vld [vmem:[%s1 + $0x3c] sm:$0xf]
      %v206 = vld [vmem:[%s2] sm:$0x1]
      %v208 = vperm.slane %v206, 0
      %v226 = vunpack.c.l.b16 %v174
      %v227 = vunpack.c.l.b16 %v175
      %v228 = vunpack.c.l.b16 %v176
      %v229 = vunpack.c.l.b16 %v177
      %v230 = vunpack.c.l.b16 %v178
      %v231 = vunpack.c.l.b16 %v179
      %v232 = vunpack.c.l.b16 %v180
      %v233 = vunpack.c.l.b16 %v181
      %v234 = vunpack.c.l.b16 %v182
      %v235 = vunpack.c.l.b16 %v183
      %v236 = vunpack.c.l.b16 %v184
      %v237 = vunpack.c.l.b16 %v185
      %v238 = vunpack.c.l.b16 %v186
      %v239 = vunpack.c.l.b16 %v187
      %v240 = vunpack.c.l.b16 %v188
      %v241 = vunpack.c.l.b16 %v189
      %v242 = vpack.c.b16 %v227, %v226
      %v243 = vpack.c.b16 %v229, %v228
      %v244 = vpack.c.b16 %v231, %v230
      %v245 = vpack.c.b16 %v233, %v232
      %v246 = vpack.c.b16 %v235, %v234
      %v247 = vpack.c.b16 %v237, %v236
      %v248 = vpack.c.b16 %v239, %v238
      %v249 = vpack.c.b16 %v241, %v240
      %v274 = vunpack.c.l.b16 %v190
      %v275 = vunpack.c.l.b16 %v191
      %v276 = vunpack.c.l.b16 %v192
      %v277 = vunpack.c.l.b16 %v193
      %v278 = vunpack.c.l.b16 %v194
      %v279 = vunpack.c.l.b16 %v195
      %v280 = vunpack.c.l.b16 %v196
      %v281 = vunpack.c.l.b16 %v197
      %v282 = vunpack.c.l.b16 %v198
      %v283 = vunpack.c.l.b16 %v199
      %v284 = vunpack.c.l.b16 %v200
      %v285 = vunpack.c.l.b16 %v201
      %v286 = vunpack.c.l.b16 %v202
      %v287 = vunpack.c.l.b16 %v203
      %v288 = vunpack.c.l.b16 %v204
      %v289 = vunpack.c.l.b16 %v205
      %v290 = vpack.c.b16 %v275, %v274
      %v291 = vpack.c.b16 %v277, %v276
      %v292 = vpack.c.b16 %v279, %v278
      %v293 = vpack.c.b16 %v281, %v280
      %v294 = vpack.c.b16 %v283, %v282
      %v295 = vpack.c.b16 %v285, %v284
      %v296 = vpack.c.b16 %v287, %v286
      %v297 = vpack.c.b16 %v289, %v288
      %306 = vmatpush.bf16.msra.mxu0 %v297
      %307 = vmatpush.bf16.msra.mxu0 %v296
      %308 = vmatpush.bf16.msra.mxu0 %v295
      %309 = vmatpush.bf16.msra.mxu0 %v294
      %310 = vmatpush.bf16.msra.mxu0 %v293
      %311 = vmatpush.bf16.msra.mxu0 %v292
      %312 = vmatpush.bf16.msra.mxu0 %v291
      %313 = vmatpush.bf16.msra.mxu0 %v290
      %314 = vmatmul.bf16.gmra.mxu0 %v242
      %v315 = vpop.f32.mrf.mxu0
      %v316 = vadd.f32 %v208, %v315
      %v317 = vpop.f32.mrf.mxu0
      %v318 = vadd.f32 %v208, %v317
      %319 = vmatmul.bf16.gmra.mxu0 %v243
      %v320 = vpop.f32.mrf.mxu0
      %v321 = vadd.f32 %v208, %v320
      %v322 = vpop.f32.mrf.mxu0
      %v323 = vadd.f32 %v208, %v322
      %324 = vmatmul.bf16.gmra.mxu0 %v244
      %v325 = vpop.f32.mrf.mxu0
      %v326 = vadd.f32 %v208, %v325
      %v327 = vpop.f32.mrf.mxu0
      %v328 = vadd.f32 %v208, %v327
      %329 = vmatmul.bf16.gmra.mxu0 %v245
      %v330 = vpop.f32.mrf.mxu0
      %v331 = vadd.f32 %v208, %v330
      %v332 = vpop.f32.mrf.mxu0
      %v333 = vadd.f32 %v208, %v332
      %334 = vmatmul.bf16.gmra.mxu0 %v246
      %v335 = vpop.f32.mrf.mxu0
      %v336 = vadd.f32 %v208, %v335
      %v337 = vpop.f32.mrf.mxu0
      %v338 = vadd.f32 %v208, %v337
      %339 = vmatmul.bf16.gmra.mxu0 %v247
      %v340 = vpop.f32.mrf.mxu0
      %v341 = vadd.f32 %v208, %v340
      %v342 = vpop.f32.mrf.mxu0
      %v343 = vadd.f32 %v208, %v342
      %344 = vmatmul.bf16.gmra.mxu0 %v248
      %v345 = vpop.f32.mrf.mxu0
      %v346 = vadd.f32 %v208, %v345
      %v347 = vpop.f32.mrf.mxu0
      %v348 = vadd.f32 %v208, %v347
      %349 = vmatmul.bf16.gmra.mxu0 %v249
      %v350 = vpop.f32.mrf.mxu0
      %v351 = vadd.f32 %v208, %v350
      %v352 = vpop.f32.mrf.mxu0
      %v353 = vadd.f32 %v208, %v352
      %354 = vdwg.mxu0
      %v355 = vpack.c.bf16 %v316, %v316
      %v356 = vpack.c.bf16 %v318, %v318
      %v357 = vpack.c.bf16 %v321, %v321
      %v358 = vpack.c.bf16 %v323, %v323
      %v359 = vpack.c.bf16 %v326, %v326
      %v360 = vpack.c.bf16 %v328, %v328
      %v361 = vpack.c.bf16 %v331, %v331
      %v362 = vpack.c.bf16 %v333, %v333
      %v363 = vpack.c.bf16 %v336, %v336
      %v364 = vpack.c.bf16 %v338, %v338
      %v365 = vpack.c.bf16 %v341, %v341
      %v366 = vpack.c.bf16 %v343, %v343
      %v367 = vpack.c.bf16 %v346, %v346
      %v368 = vpack.c.bf16 %v348, %v348
      %v369 = vpack.c.bf16 %v351, %v351
      %v370 = vpack.c.bf16 %v353, %v353
      %371 = vst [vmem:[%s172] sm:$0xf] %v355
      %372 = vst [vmem:[%s172 + $0x4] sm:$0xf] %v356
      %373 = vst [vmem:[%s172 + $0x8] sm:$0xf] %v357
      %374 = vst [vmem:[%s172 + $0xc] sm:$0xf] %v358
      %375 = vst [vmem:[%s172 + $0x10] sm:$0xf] %v359
      %376 = vst [vmem:[%s172 + $0x14] sm:$0xf] %v360
      %377 = vst [vmem:[%s172 + $0x18] sm:$0xf] %v361
      %378 = vst [vmem:[%s172 + $0x1c] sm:$0xf] %v362
      %379 = vst [vmem:[%s172 + $0x20] sm:$0xf] %v363
      %380 = vst [vmem:[%s172 + $0x24] sm:$0xf] %v364
      %381 = vst [vmem:[%s172 + $0x28] sm:$0xf] %v365
      %382 = vst [vmem:[%s172 + $0x2c] sm:$0xf] %v366
      %383 = vst [vmem:[%s172 + $0x30] sm:$0xf] %v367
      %384 = vst [vmem:[%s172 + $0x34] sm:$0xf] %v368
      %385 = vst [vmem:[%s172 + $0x38] sm:$0xf] %v369
      %386 = vst [vmem:[%s172 + $0x3c] sm:$0xf] %v370
      %s387 = smul.u32 16, %s14
      %p388 = scmp.lt.s32.totalorder %s387, 47
      %s389 = scalar_select %p388, %s387, 47
      %s390 = smul.addr %s389, 4
      %s391 = scalar_lea.vmem %s3, %s390
      // Predicated region
      $region33: #{gcn_forward.2} parent=31 // pred_check
        %p392 = pneg %p100
      $region34: #{gcn_forward.2} parent=31 // pred_check_branch
        %394 = sbr.rel (%p392) target = $region36
      $region35: #{gcn_forward.2} parent=31 // pred_region
        %s395 = smul.u32 16, %s14
      $region36: #{gcn_forward.2} parent=31 // pred_fallthru
        _
    $region32: #{gcn_forward.2} parent=5 // pred_fallthru
      _
    %p396 = scmp.le.s32.totalorder 2, %s9
    // Predicated region
    $region37: #{gcn_forward.2} parent=5 // pred_check
      %p397 = pneg %p396
    $region38: #{gcn_forward.2} parent=5 // pred_check_branch
      %399 = sbr.rel (%p397) target = $region40
    $region39: #{gcn_forward.2} parent=5 // pred_region
      %s400 = ssub.s32 %s9, 2
      // Predicated region
      $region41: #{gcn_forward.2} parent=39 // pred_check
        %p401 = pneg %p106
      $region42: #{gcn_forward.2} parent=39 // pred_check_branch
        %403 = sbr.rel (%p401) target = $region44
      $region43: #{gcn_forward.2} parent=39 // pred_region
        %s404 = smul.u32 16, %s15
        %p405 = scmp.lt.s32.totalorder %s404, 47
        %s406 = scalar_select %p405, %s404, 47
        %s407 = smul.addr %s406, 4
        %s408 = scalar_lea.vmem %s3, %s407
      $region44: #{gcn_forward.2} parent=39 // pred_fallthru
        _
    $region40: #{gcn_forward.2} parent=5 // pred_fallthru
      _
  $region6: #{gcn_forward.2} parent=0 // loop_footer
    %s13 = sadd.s32 1, %s9
  $region7: #{gcn_forward.2} parent=0 // loop_footer_branch
    %8 = sbr.rel target = $region3
  $region8: #{gcn_forward.2} parent=0 // loop_exit
    _

// kernel: gcn_forward.3
$region0: #{gcn_forward.3}
  #allocation0 [shape = 'u32[]', space=smem, size = 0x4, offset = 0x4, fixed_abs, tag = 'smem constant byte address 0x4 - core index']
  #allocation1 [shape = 'u32[72,128]{1,0:T(1,128)}', space=vmem, size = 0x9000, scoped, tag = 'internal scratch']
  #allocation2 [shape = 'bf16[384,128]{1,0:T(8,128)(2,1)}', space=vmem, size = 0x18000, scoped, tag = 'scratch operand']
  %s0 = inlined_call_operand.vmem [shape: bf16[384,384], index: 0, kind: input, shape index: {}]
  %s1 = inlined_call_operand.vmem [shape: bf16[384,128], index: 1, kind: input, shape index: {}]
  %s2 = inlined_call_operand.vmem [shape: bf16[3,128,128], index: 2, kind: input, shape index: {}]
  %s3 = inlined_call_operand.vmem [shape: f32[3,1,128], index: 3, kind: input, shape index: {}]
  %s4 = inlined_call_operand.vmem [shape: f32[384,128], index: 4, kind: output, shape index: {0}]
  %s5 = inlined_call_operand.vmem [shape: f32[384,128], index: 5, kind: output, shape index: {1}]
  %6 = xla_tuple %s4, %s5
  %s7 = sld [smem:[#allocation0]]
  $region61: #{gcn_forward.3} parent=0
    _
  %s9 = ssub.s32 1, %s7
  %s10 = scalar_select 0, %s9, %s7
  loop: start=0, step=1, limit=5
  $region2: #{gcn_forward.3} parent=0 // loop_pre_header
    _
  $region3: #{gcn_forward.3} parent=0 // loop_header
    %s12 = sphi 0, %s16
    %p13 = scmp.ge.s32.totalorder %s12, 5
    %s20 = sphi 0, %s20
    %s22 = sphi 0, %s20
    %s23 = sphi 0, %s22
    %s37 = sphi 0, %s23
    %s41 = sphi 0, %s41
    %s43 = sphi 0, %s41
    %s44 = sphi 0, %s43
    %s58 = sphi 0, %s44
    %s64 = sphi 0, %s66
    %s67 = sphi 0, %s64
    %s68 = sphi 0, %s67
    %s84 = sphi 0, %s68
    %s90 = sphi 0, %s92
    %s93 = sphi 0, %s90
    %s94 = sphi 0, %s93
    %s110 = sphi 0, %s94
    %s114 = sphi 0, %s114
    %s116 = sphi 0, %s114
    %s117 = sphi 0, %s116
    %s131 = sphi 0, %s117
    %s135 = sphi 0, %s135
    %s137 = sphi 0, %s135
    %s138 = sphi 0, %s137
    %s152 = sphi 0, %s138
  $region4: #{gcn_forward.3} parent=0 // loop_header_branch
    %15 = sbr.rel (%p13) target = $region8
  $region5: #{gcn_forward.3} parent=0 // loop_body
    %s17 = ssub.s32 %s12, 1
    %s18 = ssub.s32 %s12, 2
    %s19 = sadd.s32 %s12, 1
    %s21 = sadd.s32 %s20, 1
    %p24 = scmp.eq.s32.totalorder %s12, 2
    %p25 = scmp.ne.s32.totalorder %s20, %s22
    %p26 = scmp.eq.s32.totalorder %s12, 0
    %p27 = por %p25, %p26
    %p28 = scmp.ne.s32.totalorder %s20, %s22
    %p29 = scmp.eq.s32.totalorder %s17, 2
    %p30 = por %p28, %p29
    %p31 = scmp.ne.s32.totalorder %s22, %s23
    %p32 = scmp.eq.s32.totalorder %s17, 0
    %p33 = por %p31, %p32
    %p34 = scmp.ne.s32.totalorder %s22, %s23
    %p35 = scmp.eq.s32.totalorder %s18, 2
    %p36 = por %p34, %p35
    %p38 = scmp.ne.s32.totalorder %s23, %s37
    %p39 = scmp.eq.s32.totalorder %s18, 0
    %p40 = por %p38, %p39
    %s42 = sadd.s32 %s41, 1
    %p45 = scmp.eq.s32.totalorder %s12, 2
    %p46 = scmp.ne.s32.totalorder %s41, %s43
    %p47 = scmp.eq.s32.totalorder %s12, 0
    %p48 = por %p46, %p47
    %p49 = scmp.ne.s32.totalorder %s41, %s43
    %p50 = scmp.eq.s32.totalorder %s17, 2
    %p51 = por %p49, %p50
    %p52 = scmp.ne.s32.totalorder %s43, %s44
    %p53 = scmp.eq.s32.totalorder %s17, 0
    %p54 = por %p52, %p53
    %p55 = scmp.ne.s32.totalorder %s43, %s44
    %p56 = scmp.eq.s32.totalorder %s18, 2
    %p57 = por %p55, %p56
    %p59 = scmp.ne.s32.totalorder %s44, %s58
    %p60 = scmp.eq.s32.totalorder %s18, 0
    %p61 = por %p59, %p60
    %s62 = ssub.s32 %s12, %s19
    %p63 = scmp.eq.s32.totalorder %s62, 0
    %s65 = sadd.s32 %s64, 1
    %s66 = scalar_select %p63, %s64, %s65
    %p69 = pneg %p63
    %p70 = scmp.eq.s32.totalorder %s12, 2
    %p71 = por %p69, %p70
    %p72 = scmp.ne.s32.totalorder %s64, %s67
    %p73 = scmp.eq.s32.totalorder %s12, 0
    %p74 = por %p72, %p73
    %p75 = scmp.ne.s32.totalorder %s64, %s67
    %p76 = scmp.eq.s32.totalorder %s17, 2
    %p77 = por %p75, %p76
    %p78 = scmp.ne.s32.totalorder %s67, %s68
    %p79 = scmp.eq.s32.totalorder %s17, 0
    %p80 = por %p78, %p79
    %p81 = scmp.ne.s32.totalorder %s67, %s68
    %p82 = scmp.eq.s32.totalorder %s18, 2
    %p83 = por %p81, %p82
    %p85 = scmp.ne.s32.totalorder %s68, %s84
    %p86 = scmp.eq.s32.totalorder %s18, 0
    %p87 = por %p85, %p86
    %s88 = ssub.s32 %s12, %s19
    %p89 = scmp.eq.s32.totalorder %s88, 0
    %s91 = sadd.s32 %s90, 1
    %s92 = scalar_select %p89, %s90, %s91
    %p95 = pneg %p89
    %p96 = scmp.eq.s32.totalorder %s12, 2
    %p97 = por %p95, %p96
    %p98 = scmp.ne.s32.totalorder %s90, %s93
    %p99 = scmp.eq.s32.totalorder %s12, 0
    %p100 = por %p98, %p99
    %p101 = scmp.ne.s32.totalorder %s90, %s93
    %p102 = scmp.eq.s32.totalorder %s17, 2
    %p103 = por %p101, %p102
    %p104 = scmp.ne.s32.totalorder %s93, %s94
    %p105 = scmp.eq.s32.totalorder %s17, 0
    %p106 = por %p104, %p105
    %p107 = scmp.ne.s32.totalorder %s93, %s94
    %p108 = scmp.eq.s32.totalorder %s18, 2
    %p109 = por %p107, %p108
    %p111 = scmp.ne.s32.totalorder %s94, %s110
    %p112 = scmp.eq.s32.totalorder %s18, 0
    %p113 = por %p111, %p112
    %s115 = sadd.s32 %s114, 1
    %p118 = scmp.eq.s32.totalorder %s12, 2
    %p119 = scmp.ne.s32.totalorder %s114, %s116
    %p120 = scmp.eq.s32.totalorder %s12, 0
    %p121 = por %p119, %p120
    %p122 = scmp.ne.s32.totalorder %s114, %s116
    %p123 = scmp.eq.s32.totalorder %s17, 2
    %p124 = por %p122, %p123
    %p125 = scmp.ne.s32.totalorder %s116, %s117
    %p126 = scmp.eq.s32.totalorder %s17, 0
    %p127 = por %p125, %p126
    %p128 = scmp.ne.s32.totalorder %s116, %s117
    %p129 = scmp.eq.s32.totalorder %s18, 2
    %p130 = por %p128, %p129
    %p132 = scmp.ne.s32.totalorder %s117, %s131
    %p133 = scmp.eq.s32.totalorder %s18, 0
    %p134 = por %p132, %p133
    %s136 = sadd.s32 %s135, 1
    %p139 = scmp.eq.s32.totalorder %s12, 2
    %p140 = scmp.ne.s32.totalorder %s135, %s137
    %p141 = scmp.eq.s32.totalorder %s12, 0
    %p142 = por %p140, %p141
    %p143 = scmp.ne.s32.totalorder %s135, %s137
    %p144 = scmp.eq.s32.totalorder %s17, 2
    %p145 = por %p143, %p144
    %p146 = scmp.ne.s32.totalorder %s137, %s138
    %p147 = scmp.eq.s32.totalorder %s17, 0
    %p148 = por %p146, %p147
    %p149 = scmp.ne.s32.totalorder %s137, %s138
    %p150 = scmp.eq.s32.totalorder %s18, 2
    %p151 = por %p149, %p150
    %p153 = scmp.ne.s32.totalorder %s138, %s152
    %p154 = scmp.eq.s32.totalorder %s18, 0
    %p155 = por %p153, %p154
    %p156 = scmp.le.s32.totalorder 1, %s12
    %p157 = scmp.lt.s32.totalorder %s12, 4
    %p158 = pnand %p156, %p157
    %p159 = pneg %p158
    // Predicated region
    $region9: #{gcn_forward.3} parent=5 // pred_check
      _
    $region10: #{gcn_forward.3} parent=5 // pred_check_branch
      %161 = sbr.rel (%p158) target = $region12
    $region11: #{gcn_forward.3} parent=5 // pred_region
      %s162 = ssub.s32 %s12, 1
      // Predicated region
      $region13: #{gcn_forward.3} parent=11 // pred_check
        %p163 = pneg %p33
      $region14: #{gcn_forward.3} parent=11 // pred_check_branch
        %165 = sbr.rel (%p163) target = $region16
      $region15: #{gcn_forward.3} parent=11 // pred_region
        _
      $region16: #{gcn_forward.3} parent=11 // pred_fallthru
        _
      // Predicated region
      $region17: #{gcn_forward.3} parent=11 // pred_check
        %p166 = pneg %p54
      $region18: #{gcn_forward.3} parent=11 // pred_check_branch
        %168 = sbr.rel (%p166) target = $region20
      $region19: #{gcn_forward.3} parent=11 // pred_region
        _
      $region20: #{gcn_forward.3} parent=11 // pred_fallthru
        _
    $region12: #{gcn_forward.3} parent=5 // pred_fallthru
      _
    %p169 = scmp.lt.s32.totalorder %s12, 3
    // Predicated region
    $region21: #{gcn_forward.3} parent=5 // pred_check
      %p170 = pneg %p169
    $region22: #{gcn_forward.3} parent=5 // pred_check_branch
      %172 = sbr.rel (%p170) target = $region24
    $region23: #{gcn_forward.3} parent=5 // pred_region
      // Predicated region
      $region25: #{gcn_forward.3} parent=23 // pred_check
        %p173 = pneg %p74
      $region26: #{gcn_forward.3} parent=23 // pred_check_branch
        %175 = sbr.rel (%p173) target = $region28
      $region27: #{gcn_forward.3} parent=23 // pred_region
        %p176 = scmp.lt.s32.totalorder %s12, 2
        %s177 = scalar_select %p176, %s12, 2
        %s178 = smul.addr %s177, 16
        %s179 = smul.addr %s178, 4
        %s180 = scalar_lea.vmem %s2, %s179
      $region28: #{gcn_forward.3} parent=23 // pred_fallthru
        _
      // Predicated region
      $region29: #{gcn_forward.3} parent=23 // pred_check
        %p181 = pneg %p100
      $region30: #{gcn_forward.3} parent=23 // pred_check_branch
        %183 = sbr.rel (%p181) target = $region32
      $region31: #{gcn_forward.3} parent=23 // pred_region
        %p184 = scmp.lt.s32.totalorder %s12, 2
        %s185 = scalar_select %p184, %s12, 2
        %s186 = scalar_lea.vmem %s3, %s185
      $region32: #{gcn_forward.3} parent=23 // pred_fallthru
        _
    $region24: #{gcn_forward.3} parent=5 // pred_fallthru
      _
    %p187 = scmp.le.s32.totalorder 1, %s12
    %p188 = scmp.lt.s32.totalorder %s12, 4
    %p189 = pnand %p187, %p188
    %p190 = pneg %p189
    // Predicated region
    $region33: #{gcn_forward.3} parent=5 // pred_check
      _
    $region34: #{gcn_forward.3} parent=5 // pred_check_branch
      %192 = sbr.rel (%p189) target = $region36
    $region35: #{gcn_forward.3} parent=5 // pred_region
      %s193 = ssub.s32 %s12, 1
      %p194 = pneg %p33
      %p195 = pneg %p30
      %p196 = pneg %p54
      %p197 = pneg %p51
      %p198 = scmp.lt.s32.totalorder %s17, 2
      %s199 = scalar_select %p198, %s17, 2
      %s200 = smul.addr %s199, 16
      %s201 = smul.addr %s200, 4
      %s202 = scalar_lea.vmem %s2, %s201
      %p203 = pneg %p80
      %p204 = pneg %p77
      %p205 = scmp.lt.s32.totalorder %s17, 2
      %s206 = scalar_select %p205, %s17, 2
      %s207 = scalar_lea.vmem %s3, %s206
      %p208 = pneg %p106
      %p209 = pneg %p103
      %p210 = pneg %p127
      %p211 = pneg %p124
      %p212 = pneg %p148
      %p213 = pneg %p145
      %p214 = scmp.lt.s32.totalorder %s17, 2
      %s215 = scalar_select %p214, %s17, 2
      %s216 = smul.addr %s215, 16
      %s217 = smul.addr %s216, 4
      %s218 = scalar_lea.vmem %s2, %s217
      %p219 = scmp.lt.s32.totalorder %s17, 2
      %s220 = scalar_select %p219, %s17, 2
      %s221 = scalar_lea.vmem %s3, %s220
      %p222 = scmp.eq.s32.totalorder %s17, 0
      // Predicated region
      $region37: #{gcn_forward.3} parent=35 // pred_check
        %p223 = pneg %p222
      $region38: #{gcn_forward.3} parent=35 // pred_check_branch
        %225 = sbr.rel (%p223) target = $region40
      $region39: #{gcn_forward.3} parent=35 // pred_region
        %v226 = vld [vmem:[%s1] sm:$0xf]
        %v227 = vld [vmem:[%s1 + $0x4] sm:$0xf]
        %v228 = vld [vmem:[%s1 + $0x8] sm:$0xf]
        %v229 = vld [vmem:[%s1 + $0xc] sm:$0xf]
        %v230 = vld [vmem:[%s1 + $0x10] sm:$0xf]
        %v231 = vld [vmem:[%s1 + $0x14] sm:$0xf]
        %v232 = vld [vmem:[%s1 + $0x18] sm:$0xf]
        %v233 = vld [vmem:[%s1 + $0x1c] sm:$0xf]
        %v234 = vld [vmem:[%s1 + $0x20] sm:$0xf]
        %v235 = vld [vmem:[%s1 + $0x24] sm:$0xf]
        %v236 = vld [vmem:[%s1 + $0x28] sm:$0xf]
        %v237 = vld [vmem:[%s1 + $0x2c] sm:$0xf]
        %v238 = vld [vmem:[%s1 + $0x30] sm:$0xf]
        %v239 = vld [vmem:[%s1 + $0x34] sm:$0xf]
        %v240 = vld [vmem:[%s1 + $0x38] sm:$0xf]
        %v241 = vld [vmem:[%s1 + $0x3c] sm:$0xf]
        %v242 = vld [vmem:[%s1 + $0x40] sm:$0xf]
        %v243 = vld [vmem:[%s1 + $0x44] sm:$0xf]
        %v244 = vld [vmem:[%s1 + $0x48] sm:$0xf]
        %v245 = vld [vmem:[%s1 + $0x4c] sm:$0xf]
        %v246 = vld [vmem:[%s1 + $0x50] sm:$0xf]
        %v247 = vld [vmem:[%s1 + $0x54] sm:$0xf]
        %v248 = vld [vmem:[%s1 + $0x58] sm:$0xf]
        %v249 = vld [vmem:[%s1 + $0x5c] sm:$0xf]
        %v250 = vld [vmem:[%s1 + $0x60] sm:$0xf]
        %v251 = vld [vmem:[%s1 + $0x64] sm:$0xf]
        %v252 = vld [vmem:[%s1 + $0x68] sm:$0xf]
        %v253 = vld [vmem:[%s1 + $0x6c] sm:$0xf]
        %v254 = vld [vmem:[%s1 + $0x70] sm:$0xf]
        %v255 = vld [vmem:[%s1 + $0x74] sm:$0xf]
        %v256 = vld [vmem:[%s1 + $0x78] sm:$0xf]
        %v257 = vld [vmem:[%s1 + $0x7c] sm:$0xf]
        %v258 = vld [vmem:[%s1 + $0x80] sm:$0xf]
        %v259 = vld [vmem:[%s1 + $0x84] sm:$0xf]
        %v260 = vld [vmem:[%s1 + $0x88] sm:$0xf]
        %v261 = vld [vmem:[%s1 + $0x8c] sm:$0xf]
        %v262 = vld [vmem:[%s1 + $0x90] sm:$0xf]
        %v263 = vld [vmem:[%s1 + $0x94] sm:$0xf]
        %v264 = vld [vmem:[%s1 + $0x98] sm:$0xf]
        %v265 = vld [vmem:[%s1 + $0x9c] sm:$0xf]
        %v266 = vld [vmem:[%s1 + $0xa0] sm:$0xf]
        %v267 = vld [vmem:[%s1 + $0xa4] sm:$0xf]
        %v268 = vld [vmem:[%s1 + $0xa8] sm:$0xf]
        %v269 = vld [vmem:[%s1 + $0xac] sm:$0xf]
        %v270 = vld [vmem:[%s1 + $0xb0] sm:$0xf]
        %v271 = vld [vmem:[%s1 + $0xb4] sm:$0xf]
        %v272 = vld [vmem:[%s1 + $0xb8] sm:$0xf]
        %v273 = vld [vmem:[%s1 + $0xbc] sm:$0xf]
        %274 = vst [vmem:[#allocation2] sm:$0xf] %v226
        %275 = vst [vmem:[#allocation2 + $0x4] sm:$0xf] %v227
        %276 = vst [vmem:[#allocation2 + $0x8] sm:$0xf] %v228
        %277 = vst [vmem:[#allocation2 + $0xc] sm:$0xf] %v229
        %278 = vst [vmem:[#allocation2 + $0x10] sm:$0xf] %v230
        %279 = vst [vmem:[#allocation2 + $0x14] sm:$0xf] %v231
        %280 = vst [vmem:[#allocation2 + $0x18] sm:$0xf] %v232
        %281 = vst [vmem:[#allocation2 + $0x1c] sm:$0xf] %v233
        %282 = vst [vmem:[#allocation2 + $0x20] sm:$0xf] %v234
        %283 = vst [vmem:[#allocation2 + $0x24] sm:$0xf] %v235
        %284 = vst [vmem:[#allocation2 + $0x28] sm:$0xf] %v236
        %285 = vst [vmem:[#allocation2 + $0x2c] sm:$0xf] %v237
        %286 = vst [vmem:[#allocation2 + $0x30] sm:$0xf] %v238
        %287 = vst [vmem:[#allocation2 + $0x34] sm:$0xf] %v239
        %288 = vst [vmem:[#allocation2 + $0x38] sm:$0xf] %v240
        %289 = vst [vmem:[#allocation2 + $0x3c] sm:$0xf] %v241
        %290 = vst [vmem:[#allocation2 + $0x40] sm:$0xf] %v242
        %291 = vst [vmem:[#allocation2 + $0x44] sm:$0xf] %v243
        %292 = vst [vmem:[#allocation2 + $0x48] sm:$0xf] %v244
        %293 = vst [vmem:[#allocation2 + $0x4c] sm:$0xf] %v245
        %294 = vst [vmem:[#allocation2 + $0x50] sm:$0xf] %v246
        %295 = vst [vmem:[#allocation2 + $0x54] sm:$0xf] %v247
        %296 = vst [vmem:[#allocation2 + $0x58] sm:$0xf] %v248
        %297 = vst [vmem:[#allocation2 + $0x5c] sm:$0xf] %v249
        %298 = vst [vmem:[#allocation2 + $0x60] sm:$0xf] %v250
        %299 = vst [vmem:[#allocation2 + $0x64] sm:$0xf] %v251
        %300 = vst [vmem:[#allocation2 + $0x68] sm:$0xf] %v252
        %301 = vst [vmem:[#allocation2 + $0x6c] sm:$0xf] %v253
        %302 = vst [vmem:[#allocation2 + $0x70] sm:$0xf] %v254
        %303 = vst [vmem:[#allocation2 + $0x74] sm:$0xf] %v255
        %304 = vst [vmem:[#allocation2 + $0x78] sm:$0xf] %v256
        %305 = vst [vmem:[#allocation2 + $0x7c] sm:$0xf] %v257
        %306 = vst [vmem:[#allocation2 + $0x80] sm:$0xf] %v258
        %307 = vst [vmem:[#allocation2 + $0x84] sm:$0xf] %v259
        %308 = vst [vmem:[#allocation2 + $0x88] sm:$0xf] %v260
        %309 = vst [vmem:[#allocation2 + $0x8c] sm:$0xf] %v261
        %310 = vst [vmem:[#allocation2 + $0x90] sm:$0xf] %v262
        %311 = vst [vmem:[#allocation2 + $0x94] sm:$0xf] %v263
        %312 = vst [vmem:[#allocation2 + $0x98] sm:$0xf] %v264
        %313 = vst [vmem:[#allocation2 + $0x9c] sm:$0xf] %v265
        %314 = vst [vmem:[#allocation2 + $0xa0] sm:$0xf] %v266
        %315 = vst [vmem:[#allocation2 + $0xa4] sm:$0xf] %v267
        %316 = vst [vmem:[#allocation2 + $0xa8] sm:$0xf] %v268
        %317 = vst [vmem:[#allocation2 + $0xac] sm:$0xf] %v269
        %318 = vst [vmem:[#allocation2 + $0xb0] sm:$0xf] %v270
        %319 = vst [vmem:[#allocation2 + $0xb4] sm:$0xf] %v271
        %320 = vst [vmem:[#allocation2 + $0xb8] sm:$0xf] %v272
        %321 = vst [vmem:[#allocation2 + $0xbc] sm:$0xf] %v273
      $region40: #{gcn_forward.3} parent=35 // pred_fallthru
        _
      %v322 = vld [vmem:[%s0] sm:$0xff]
      %v323 = vld [vmem:[%s0 + $0x8] sm:$0xf]
      %v324 = vld [vmem:[%s0 + $0xc] sm:$0xff]
      %v325 = vld [vmem:[%s0 + $0x14] sm:$0xf]
      %v326 = vld [vmem:[%s0 + $0x18] sm:$0xff]
      %v327 = vld [vmem:[%s0 + $0x20] sm:$0xf]
      %v328 = vld [vmem:[%s0 + $0x24] sm:$0xff]
      %v329 = vld [vmem:[%s0 + $0x2c] sm:$0xf]
      %v330 = vld [vmem:[%s0 + $0x30] sm:$0xff]
      %v331 = vld [vmem:[%s0 + $0x38] sm:$0xf]
      %v332 = vld [vmem:[%s0 + $0x3c] sm:$0xff]
      %v333 = vld [vmem:[%s0 + $0x44] sm:$0xf]
      %v334 = vld [vmem:[%s0 + $0x48] sm:$0xff]
      %v335 = vld [vmem:[%s0 + $0x50] sm:$0xf]
      %v336 = vld [vmem:[%s0 + $0x54] sm:$0xff]
      %v337 = vld [vmem:[%s0 + $0x5c] sm:$0xf]
      %v338 = vld [vmem:[%s0 + $0x60] sm:$0xff]
      %v339 = vld [vmem:[%s0 + $0x68] sm:$0xf]
      %v340 = vld [vmem:[%s0 + $0x6c] sm:$0xff]
      %v341 = vld [vmem:[%s0 + $0x74] sm:$0xf]
      %v342 = vld [vmem:[%s0 + $0x78] sm:$0xff]
      %v343 = vld [vmem:[%s0 + $0x80] sm:$0xf]
      %v344 = vld [vmem:[%s0 + $0x84] sm:$0xff]
      %v345 = vld [vmem:[%s0 + $0x8c] sm:$0xf]
      %v346 = vld [vmem:[%s0 + $0x90] sm:$0xff]
      %v347 = vld [vmem:[%s0 + $0x98] sm:$0xf]
      %v348 = vld [vmem:[%s0 + $0x9c] sm:$0xff]
      %v349 = vld [vmem:[%s0 + $0xa4] sm:$0xf]
      %v350 = vld [vmem:[%s0 + $0xa8] sm:$0xff]
      %v351 = vld [vmem:[%s0 + $0xb0] sm:$0xf]
      %v352 = vld [vmem:[%s0 + $0xb4] sm:$0xff]
      %v353 = vld [vmem:[%s0 + $0xbc] sm:$0xf]
      %v354 = vld [vmem:[%s0 + $0xc0] sm:$0xff]
      %v355 = vld [vmem:[%s0 + $0xc8] sm:$0xf]
      %v356 = vld [vmem:[%s0 + $0xcc] sm:$0xff]
      %v357 = vld [vmem:[%s0 + $0xd4] sm:$0xf]
      %v358 = vld [vmem:[%s0 + $0xd8] sm:$0xff]
      %v359 = vld [vmem:[%s0 + $0xe0] sm:$0xf]
      %v360 = vld [vmem:[%s0 + $0xe4] sm:$0xff]
      %v361 = vld [vmem:[%s0 + $0xec] sm:$0xf]
      %v362 = vld [vmem:[%s0 + $0xf0] sm:$0xff]
      %v363 = vld [vmem:[%s0 + $0xf8] sm:$0xf]
      %v364 = vld [vmem:[%s0 + $0xfc] sm:$0xff]
      %v365 = vld [vmem:[%s0 + $0x104] sm:$0xf]
      %v366 = vld [vmem:[%s0 + $0x108] sm:$0xff]
      %v367 = vld [vmem:[%s0 + $0x110] sm:$0xf]
      %v368 = vld [vmem:[%s0 + $0x114] sm:$0xff]
      %v369 = vld [vmem:[%s0 + $0x11c] sm:$0xf]
      %v370 = vld [vmem:[%s0 + $0x120] sm:$0xff]
      %v371 = vld [vmem:[%s0 + $0x128] sm:$0xf]
      %v372 = vld [vmem:[%s0 + $0x12c] sm:$0xff]
      %v373 = vld [vmem:[%s0 + $0x134] sm:$0xf]
      %v374 = vld [vmem:[%s0 + $0x138] sm:$0xff]
      %v375 = vld [vmem:[%s0 + $0x140] sm:$0xf]
      %v376 = vld [vmem:[%s0 + $0x144] sm:$0xff]
      %v377 = vld [vmem:[%s0 + $0x14c] sm:$0xf]
      %v378 = vld [vmem:[%s0 + $0x150] sm:$0xff]
      %v379 = vld [vmem:[%s0 + $0x158] sm:$0xf]
      %v380 = vld [vmem:[%s0 + $0x15c] sm:$0xff]
      %v381 = vld [vmem:[%s0 + $0x164] sm:$0xf]
      %v382 = vld [vmem:[%s0 + $0x168] sm:$0xff]
      %v383 = vld [vmem:[%s0 + $0x170] sm:$0xf]
      %v384 = vld [vmem:[%s0 + $0x174] sm:$0xff]
      %v385 = vld [vmem:[%s0 + $0x17c] sm:$0xf]
      %v386 = vld [vmem:[%s0 + $0x180] sm:$0xff]
      %v387 = vld [vmem:[%s0 + $0x188] sm:$0xf]
      %v388 = vld [vmem:[%s0 + $0x18c] sm:$0xff]
      %v389 = vld [vmem:[%s0 + $0x194] sm:$0xf]
      %v390 = vld [vmem:[%s0 + $0x198] sm:$0xff]
      %v391 = vld [vmem:[%s0 + $0x1a0] sm:$0xf]
      %v392 = vld [vmem:[%s0 + $0x1a4] sm:$0xff]
      %v393 = vld [vmem:[%s0 + $0x1ac] sm:$0xf]
      %v394 = vld [vmem:[%s0 + $0x1b0] sm:$0xff]
      %v395 = vld [vmem:[%s0 + $0x1b8] sm:$0xf]
      %v396 = vld [vmem:[%s0 + $0x1bc] sm:$0xff]
      %v397 = vld [vmem:[%s0 + $0x1c4] sm:$0xf]
      %v398 = vld [vmem:[%s0 + $0x1c8] sm:$0xff]
      %v399 = vld [vmem:[%s0 + $0x1d0] sm:$0xf]
      %v400 = vld [vmem:[%s0 + $0x1d4] sm:$0xff]
      %v401 = vld [vmem:[%s0 + $0x1dc] sm:$0xf]
      %v402 = vld [vmem:[%s0 + $0x1e0] sm:$0xff]
      %v403 = vld [vmem:[%s0 + $0x1e8] sm:$0xf]
      %v404 = vld [vmem:[%s0 + $0x1ec] sm:$0xff]
      %v405 = vld [vmem:[%s0 + $0x1f4] sm:$0xf]
      %v406 = vld [vmem:[%s0 + $0x1f8] sm:$0xff]
      %v407 = vld [vmem:[%s0 + $0x200] sm:$0xf]
      %v408 = vld [vmem:[%s0 + $0x204] sm:$0xff]
      %v409 = vld [vmem:[%s0 + $0x20c] sm:$0xf]
      %v410 = vld [vmem:[%s0 + $0x210] sm:$0xff]
      %v411 = vld [vmem:[%s0 + $0x218] sm:$0xf]
      %v412 = vld [vmem:[%s0 + $0x21c] sm:$0xff]
      %v413 = vld [vmem:[%s0 + $0x224] sm:$0xf]
      %v414 = vld [vmem:[%s0 + $0x228] sm:$0xff]
      %v415 = vld [vmem:[%s0 + $0x230] sm:$0xf]
      %v416 = vld [vmem:[%s0 + $0x234] sm:$0xff]
      %v417 = vld [vmem:[%s0 + $0x23c] sm:$0xf]
      %v418 = vld [vmem:[#allocation2] sm:$0xf]
      %v419 = vld [vmem:[#allocation2 + $0x4] sm:$0xf]
      %v420 = vld [vmem:[#allocation2 + $0x8] sm:$0xf]
      %v421 = vld [vmem:[#allocation2 + $0xc] sm:$0xf]
      %v422 = vld [vmem:[#allocation2 + $0x10] sm:$0xf]
      %v423 = vld [vmem:[#allocation2 + $0x14] sm:$0xf]
      %v424 = vld [vmem:[#allocation2 + $0x18] sm:$0xf]
      %v425 = vld [vmem:[#allocation2 + $0x1c] sm:$0xf]
      %v426 = vld [vmem:[#allocation2 + $0x20] sm:$0xf]
      %v427 = vld [vmem:[#allocation2 + $0x24] sm:$0xf]
      %v428 = vld [vmem:[#allocation2 + $0x28] sm:$0xf]
      %v429 = vld [vmem:[#allocation2 + $0x2c] sm:$0xf]
      %v430 = vld [vmem:[#allocation2 + $0x30] sm:$0xf]
      %v431 = vld [vmem:[#allocation2 + $0x34] sm:$0xf]
      %v432 = vld [vmem:[#allocation2 + $0x38] sm:$0xf]
      %v433 = vld [vmem:[#allocation2 + $0x3c] sm:$0xf]
      %v434 = vld [vmem:[#allocation2 + $0x40] sm:$0xf]
      %v435 = vld [vmem:[#allocation2 + $0x44] sm:$0xf]
      %v436 = vld [vmem:[#allocation2 + $0x48] sm:$0xf]
      %v437 = vld [vmem:[#allocation2 + $0x4c] sm:$0xf]
      %v438 = vld [vmem:[#allocation2 + $0x50] sm:$0xf]
      %v439 = vld [vmem:[#allocation2 + $0x54] sm:$0xf]
      %v440 = vld [vmem:[#allocation2 + $0x58] sm:$0xf]
      %v441 = vld [vmem:[#allocation2 + $0x5c] sm:$0xf]
      %v442 = vld [vmem:[#allocation2 + $0x60] sm:$0xf]
      %v443 = vld [vmem:[#allocation2 + $0x64] sm:$0xf]
      %v444 = vld [vmem:[#allocation2 + $0x68] sm:$0xf]
      %v445 = vld [vmem:[#allocation2 + $0x6c] sm:$0xf]
      %v446 = vld [vmem:[#allocation2 + $0x70] sm:$0xf]
      %v447 = vld [vmem:[#allocation2 + $0x74] sm:$0xf]
      %v448 = vld [vmem:[#allocation2 + $0x78] sm:$0xf]
      %v449 = vld [vmem:[#allocation2 + $0x7c] sm:$0xf]
      %v450 = vld [vmem:[#allocation2 + $0x80] sm:$0xf]
      %v451 = vld [vmem:[#allocation2 + $0x84] sm:$0xf]
      %v452 = vld [vmem:[#allocation2 + $0x88] sm:$0xf]
      %v453 = vld [vmem:[#allocation2 + $0x8c] sm:$0xf]
      %v454 = vld [vmem:[#allocation2 + $0x90] sm:$0xf]
      %v455 = vld [vmem:[#allocation2 + $0x94] sm:$0xf]
      %v456 = vld [vmem:[#allocation2 + $0x98] sm:$0xf]
      %v457 = vld [vmem:[#allocation2 + $0x9c] sm:$0xf]
      %v458 = vld [vmem:[#allocation2 + $0xa0] sm:$0xf]
      %v459 = vld [vmem:[#allocation2 + $0xa4] sm:$0xf]
      %v460 = vld [vmem:[#allocation2 + $0xa8] sm:$0xf]
      %v461 = vld [vmem:[#allocation2 + $0xac] sm:$0xf]
      %v462 = vld [vmem:[#allocation2 + $0xb0] sm:$0xf]
      %v463 = vld [vmem:[#allocation2 + $0xb4] sm:$0xf]
      %v464 = vld [vmem:[#allocation2 + $0xb8] sm:$0xf]
      %v465 = vld [vmem:[#allocation2 + $0xbc] sm:$0xf]
      %v562 = vunpack.c.l.b16 %v322
      %v563 = vunpack.c.h.b16 %v322
      %v564 = vunpack.c.l.b16 %v323
      %v565 = vunpack.c.l.b16 %v324
      %v566 = vunpack.c.h.b16 %v324
      %v567 = vunpack.c.l.b16 %v325
      %v568 = vunpack.c.l.b16 %v326
      %v569 = vunpack.c.h.b16 %v326
      %v570 = vunpack.c.l.b16 %v327
      %v571 = vunpack.c.l.b16 %v328
      %v572 = vunpack.c.h.b16 %v328
      %v573 = vunpack.c.l.b16 %v329
      %v574 = vunpack.c.l.b16 %v330
      %v575 = vunpack.c.h.b16 %v330
      %v576 = vunpack.c.l.b16 %v331
      %v577 = vunpack.c.l.b16 %v332
      %v578 = vunpack.c.h.b16 %v332
      %v579 = vunpack.c.l.b16 %v333
      %v580 = vunpack.c.l.b16 %v334
      %v581 = vunpack.c.h.b16 %v334
      %v582 = vunpack.c.l.b16 %v335
      %v583 = vunpack.c.l.b16 %v336
      %v584 = vunpack.c.h.b16 %v336
      %v585 = vunpack.c.l.b16 %v337
      %v586 = vunpack.c.l.b16 %v338
      %v587 = vunpack.c.h.b16 %v338
      %v588 = vunpack.c.l.b16 %v339
      %v589 = vunpack.c.l.b16 %v340
      %v590 = vunpack.c.h.b16 %v340
      %v591 = vunpack.c.l.b16 %v341
      %v592 = vunpack.c.l.b16 %v342
      %v593 = vunpack.c.h.b16 %v342
      %v594 = vunpack.c.l.b16 %v343
      %v595 = vunpack.c.l.b16 %v344
      %v596 = vunpack.c.h.b16 %v344
      %v597 = vunpack.c.l.b16 %v345
      %v598 = vunpack.c.l.b16 %v346
      %v599 = vunpack.c.h.b16 %v346
      %v600 = vunpack.c.l.b16 %v347
      %v601 = vunpack.c.l.b16 %v348
      %v602 = vunpack.c.h.b16 %v348
      %v603 = vunpack.c.l.b16 %v349
      %v604 = vunpack.c.l.b16 %v350
      %v605 = vunpack.c.h.b16 %v350
      %v606 = vunpack.c.l.b16 %v351
      %v607 = vunpack.c.l.b16 %v352
      %v608 = vunpack.c.h.b16 %v352
      %v609 = vunpack.c.l.b16 %v353
      %v610 = vunpack.c.l.b16 %v354
      %v611 = vunpack.c.h.b16 %v354
      %v612 = vunpack.c.l.b16 %v355
      %v613 = vunpack.c.l.b16 %v356
      %v614 = vunpack.c.h.b16 %v356
      %v615 = vunpack.c.l.b16 %v357
      %v616 = vunpack.c.l.b16 %v358
      %v617 = vunpack.c.h.b16 %v358
      %v618 = vunpack.c.l.b16 %v359
      %v619 = vunpack.c.l.b16 %v360
      %v620 = vunpack.c.h.b16 %v360
      %v621 = vunpack.c.l.b16 %v361
      %v622 = vunpack.c.l.b16 %v362
      %v623 = vunpack.c.h.b16 %v362
      %v624 = vunpack.c.l.b16 %v363
      %v625 = vunpack.c.l.b16 %v364
      %v626 = vunpack.c.h.b16 %v364
      %v627 = vunpack.c.l.b16 %v365
      %v628 = vunpack.c.l.b16 %v366
      %v629 = vunpack.c.h.b16 %v366
      %v630 = vunpack.c.l.b16 %v367
      %v631 = vunpack.c.l.b16 %v368
      %v632 = vunpack.c.h.b16 %v368
      %v633 = vunpack.c.l.b16 %v369
      %v634 = vunpack.c.l.b16 %v370
      %v635 = vunpack.c.h.b16 %v370
      %v636 = vunpack.c.l.b16 %v371
      %v637 = vunpack.c.l.b16 %v372
      %v638 = vunpack.c.h.b16 %v372
      %v639 = vunpack.c.l.b16 %v373
      %v640 = vunpack.c.l.b16 %v374
      %v641 = vunpack.c.h.b16 %v374
      %v642 = vunpack.c.l.b16 %v375
      %v643 = vunpack.c.l.b16 %v376
      %v644 = vunpack.c.h.b16 %v376
      %v645 = vunpack.c.l.b16 %v377
      %v646 = vunpack.c.l.b16 %v378
      %v647 = vunpack.c.h.b16 %v378
      %v648 = vunpack.c.l.b16 %v379
      %v649 = vunpack.c.l.b16 %v380
      %v650 = vunpack.c.h.b16 %v380
      %v651 = vunpack.c.l.b16 %v381
      %v652 = vunpack.c.l.b16 %v382
      %v653 = vunpack.c.h.b16 %v382
      %v654 = vunpack.c.l.b16 %v383
      %v655 = vunpack.c.l.b16 %v384
      %v656 = vunpack.c.h.b16 %v384
      %v657 = vunpack.c.l.b16 %v385
      %v658 = vunpack.c.l.b16 %v386
      %v659 = vunpack.c.h.b16 %v386
      %v660 = vunpack.c.l.b16 %v387
      %v661 = vunpack.c.l.b16 %v388
      %v662 = vunpack.c.h.b16 %v388
      %v663 = vunpack.c.l.b16 %v389
      %v664 = vunpack.c.l.b16 %v390
      %v665 = vunpack.c.h.b16 %v390
      %v666 = vunpack.c.l.b16 %v391
      %v667 = vunpack.c.l.b16 %v392
      %v668 = vunpack.c.h.b16 %v392
      %v669 = vunpack.c.l.b16 %v393
      %v670 = vunpack.c.l.b16 %v394
      %v671 = vunpack.c.h.b16 %v394
      %v672 = vunpack.c.l.b16 %v395
      %v673 = vunpack.c.l.b16 %v396
      %v674 = vunpack.c.h.b16 %v396
      %v675 = vunpack.c.l.b16 %v397
      %v676 = vunpack.c.l.b16 %v398
      %v677 = vunpack.c.h.b16 %v398
      %v678 = vunpack.c.l.b16 %v399
      %v679 = vunpack.c.l.b16 %v400
      %v680 = vunpack.c.h.b16 %v400
      %v681 = vunpack.c.l.b16 %v401
      %v682 = vunpack.c.l.b16 %v402
      %v683 = vunpack.c.h.b16 %v402
      %v684 = vunpack.c.l.b16 %v403
      %v685 = vunpack.c.l.b16 %v404
      %v686 = vunpack.c.h.b16 %v404
      %v687 = vunpack.c.l.b16 %v405
      %v688 = vunpack.c.l.b16 %v406
      %v689 = vunpack.c.h.b16 %v406
      %v690 = vunpack.c.l.b16 %v407
      %v691 = vunpack.c.l.b16 %v408
      %v692 = vunpack.c.h.b16 %v408
      %v693 = vunpack.c.l.b16 %v409
      %v694 = vunpack.c.l.b16 %v410
      %v695 = vunpack.c.h.b16 %v410
      %v696 = vunpack.c.l.b16 %v411
      %v697 = vunpack.c.l.b16 %v412
      %v698 = vunpack.c.h.b16 %v412
      %v699 = vunpack.c.l.b16 %v413
      %v700 = vunpack.c.l.b16 %v414
      %v701 = vunpack.c.h.b16 %v414
      %v702 = vunpack.c.l.b16 %v415
      %v703 = vunpack.c.l.b16 %v416
      %v704 = vunpack.c.h.b16 %v416
      %v705 = vunpack.c.l.b16 %v417
      %v706 = vpack.c.b16 %v565, %v562
      %v707 = vpack.c.b16 %v566, %v563
      %v708 = vpack.c.b16 %v567, %v564
      %v709 = vpack.c.b16 %v571, %v568
      %v710 = vpack.c.b16 %v572, %v569
      %v711 = vpack.c.b16 %v573, %v570
      %v712 = vpack.c.b16 %v577, %v574
      %v713 = vpack.c.b16 %v578, %v575
      %v714 = vpack.c.b16 %v579, %v576
      %v715 = vpack.c.b16 %v583, %v580
      %v716 = vpack.c.b16 %v584, %v581
      %v717 = vpack.c.b16 %v585, %v582
      %v718 = vpack.c.b16 %v589, %v586
      %v719 = vpack.c.b16 %v590, %v587
      %v720 = vpack.c.b16 %v591, %v588
      %v721 = vpack.c.b16 %v595, %v592
      %v722 = vpack.c.b16 %v596, %v593
      %v723 = vpack.c.b16 %v597, %v594
      %v724 = vpack.c.b16 %v601, %v598
      %v725 = vpack.c.b16 %v602, %v599
      %v726 = vpack.c.b16 %v603, %v600
      %v727 = vpack.c.b16 %v607, %v604
      %v728 = vpack.c.b16 %v608, %v605
      %v729 = vpack.c.b16 %v609, %v606
      %v730 = vpack.c.b16 %v613, %v610
      %v731 = vpack.c.b16 %v614, %v611
      %v732 = vpack.c.b16 %v615, %v612
      %v733 = vpack.c.b16 %v619, %v616
      %v734 = vpack.c.b16 %v620, %v617
      %v735 = vpack.c.b16 %v621, %v618
      %v736 = vpack.c.b16 %v625, %v622
      %v737 = vpack.c.b16 %v626, %v623
      %v738 = vpack.c.b16 %v627, %v624
      %v739 = vpack.c.b16 %v631, %v628
      %v740 = vpack.c.b16 %v632, %v629
      %v741 = vpack.c.b16 %v633, %v630
      %v742 = vpack.c.b16 %v637, %v634
      %v743 = vpack.c.b16 %v638, %v635
      %v744 = vpack.c.b16 %v639, %v636
      %v745 = vpack.c.b16 %v643, %v640
      %v746 = vpack.c.b16 %v644, %v641
      %v747 = vpack.c.b16 %v645, %v642
      %v748 = vpack.c.b16 %v649, %v646
      %v749 = vpack.c.b16 %v650, %v647
      %v750 = vpack.c.b16 %v651, %v648
      %v751 = vpack.c.b16 %v655, %v652
      %v752 = vpack.c.b16 %v656, %v653
      %v753 = vpack.c.b16 %v657, %v654
      %v754 = vpack.c.b16 %v661, %v658
      %v755 = vpack.c.b16 %v662, %v659
      %v756 = vpack.c.b16 %v663, %v660
      %v757 = vpack.c.b16 %v667, %v664
      %v758 = vpack.c.b16 %v668, %v665
      %v759 = vpack.c.b16 %v669, %v666
      %v760 = vpack.c.b16 %v673, %v670
      %v761 = vpack.c.b16 %v674, %v671
      %v762 = vpack.c.b16 %v675, %v672
      %v763 = vpack.c.b16 %v679, %v676
      %v764 = vpack.c.b16 %v680, %v677
      %v765 = vpack.c.b16 %v681, %v678
      %v766 = vpack.c.b16 %v685, %v682
      %v767 = vpack.c.b16 %v686, %v683
      %v768 = vpack.c.b16 %v687, %v684
      %v769 = vpack.c.b16 %v691, %v688
      %v770 = vpack.c.b16 %v692, %v689
      %v771 = vpack.c.b16 %v693, %v690
      %v772 = vpack.c.b16 %v697, %v694
      %v773 = vpack.c.b16 %v698, %v695
      %v774 = vpack.c.b16 %v699, %v696
      %v775 = vpack.c.b16 %v703, %v700
      %v776 = vpack.c.b16 %v704, %v701
      %v777 = vpack.c.b16 %v705, %v702
      %v898 = vunpack.c.l.b16 %v418
      %v899 = vunpack.c.l.b16 %v419
      %v900 = vunpack.c.l.b16 %v420
      %v901 = vunpack.c.l.b16 %v421
      %v902 = vunpack.c.l.b16 %v422
      %v903 = vunpack.c.l.b16 %v423
      %v904 = vunpack.c.l.b16 %v424
      %v905 = vunpack.c.l.b16 %v425
      %v906 = vunpack.c.l.b16 %v426
      %v907 = vunpack.c.l.b16 %v427
      %v908 = vunpack.c.l.b16 %v428
      %v909 = vunpack.c.l.b16 %v429
      %v910 = vunpack.c.l.b16 %v430
      %v911 = vunpack.c.l.b16 %v431
      %v912 = vunpack.c.l.b16 %v432
      %v913 = vunpack.c.l.b16 %v433
      %v914 = vunpack.c.l.b16 %v434
      %v915 = vunpack.c.l.b16 %v435
      %v916 = vunpack.c.l.b16 %v436
      %v917 = vunpack.c.l.b16 %v437
      %v918 = vunpack.c.l.b16 %v438
      %v919 = vunpack.c.l.b16 %v439
      %v920 = vunpack.c.l.b16 %v440
      %v921 = vunpack.c.l.b16 %v441
      %v922 = vunpack.c.l.b16 %v442
      %v923 = vunpack.c.l.b16 %v443
      %v924 = vunpack.c.l.b16 %v444
      %v925 = vunpack.c.l.b16 %v445
      %v926 = vunpack.c.l.b16 %v446
      %v927 = vunpack.c.l.b16 %v447
      %v928 = vunpack.c.l.b16 %v448
      %v929 = vunpack.c.l.b16 %v449
      %v930 = vunpack.c.l.b16 %v450
      %v931 = vunpack.c.l.b16 %v451
      %v932 = vunpack.c.l.b16 %v452
      %v933 = vunpack.c.l.b16 %v453
      %v934 = vunpack.c.l.b16 %v454
      %v935 = vunpack.c.l.b16 %v455
      %v936 = vunpack.c.l.b16 %v456
      %v937 = vunpack.c.l.b16 %v457
      %v938 = vunpack.c.l.b16 %v458
      %v939 = vunpack.c.l.b16 %v459
      %v940 = vunpack.c.l.b16 %v460
      %v941 = vunpack.c.l.b16 %v461
      %v942 = vunpack.c.l.b16 %v462
      %v943 = vunpack.c.l.b16 %v463
      %v944 = vunpack.c.l.b16 %v464
      %v945 = vunpack.c.l.b16 %v465
      %v946 = vpack.c.b16 %v899, %v898
      %v947 = vpack.c.b16 %v901, %v900
      %v948 = vpack.c.b16 %v903, %v902
      %v949 = vpack.c.b16 %v905, %v904
      %v950 = vpack.c.b16 %v907, %v906
      %v951 = vpack.c.b16 %v909, %v908
      %v952 = vpack.c.b16 %v911, %v910
      %v953 = vpack.c.b16 %v913, %v912
      %v954 = vpack.c.b16 %v915, %v914
      %v955 = vpack.c.b16 %v917, %v916
      %v956 = vpack.c.b16 %v919, %v918
      %v957 = vpack.c.b16 %v921, %v920
      %v958 = vpack.c.b16 %v923, %v922
      %v959 = vpack.c.b16 %v925, %v924
      %v960 = vpack.c.b16 %v927, %v926
      %v961 = vpack.c.b16 %v929, %v928
      %v962 = vpack.c.b16 %v931, %v930
      %v963 = vpack.c.b16 %v933, %v932
      %v964 = vpack.c.b16 %v935, %v934
      %v965 = vpack.c.b16 %v937, %v936
      %v966 = vpack.c.b16 %v939, %v938
      %v967 = vpack.c.b16 %v941, %v940
      %v968 = vpack.c.b16 %v943, %v942
      %v969 = vpack.c.b16 %v945, %v944
      %994 = vmatpush.bf16.msra.mxu0 %v953
      %995 = vmatpush.bf16.msra.mxu0 %v952
      %996 = vmatpush.bf16.msra.mxu0 %v951
      %997 = vmatpush.bf16.msra.mxu0 %v950
      %998 = vmatpush.bf16.msra.mxu0 %v949
      %999 = vmatpush.bf16.msra.mxu0 %v948
      %1000 = vmatpush.bf16.msra.mxu0 %v947
      %1001 = vmatpush.bf16.msra.mxu0 %v946
      %1002 = vmatmul.bf16.gmra.mxu0 %v706
      %v1003 = vpop.f32.mrf.mxu0
      %v1004 = vadd.f32 0.0, %v1003
      %v1005 = vpop.f32.mrf.mxu0
      %v1006 = vadd.f32 0.0, %v1005
      %1007 = vmatmul.bf16.gmra.mxu0 %v709
      %v1008 = vpop.f32.mrf.mxu0
      %v1009 = vadd.f32 0.0, %v1008
      %v1010 = vpop.f32.mrf.mxu0
      %v1011 = vadd.f32 0.0, %v1010
      %1012 = vmatmul.bf16.gmra.mxu0 %v712
      %v1013 = vpop.f32.mrf.mxu0
      %v1014 = vadd.f32 0.0, %v1013
      %v1015 = vpop.f32.mrf.mxu0
      %v1016 = vadd.f32 0.0, %v1015
      %1017 = vmatmul.bf16.gmra.mxu0 %v715
      %v1018 = vpop.f32.mrf.mxu0
      %v1019 = vadd.f32 0.0, %v1018
      %v1020 = vpop.f32.mrf.mxu0
      %v1021 = vadd.f32 0.0, %v1020
      %1022 = vmatmul.bf16.gmra.mxu0 %v718
      %v1023 = vpop.f32.mrf.mxu0
      %v1024 = vadd.f32 0.0, %v1023
      %v1025 = vpop.f32.mrf.mxu0
      %v1026 = vadd.f32 0.0, %v1025
      %1027 = vmatmul.bf16.gmra.mxu0 %v721
      %v1028 = vpop.f32.mrf.mxu0
      %v1029 = vadd.f32 0.0, %v1028
      %v1030 = vpop.f32.mrf.mxu0
      %v1031 = vadd.f32 0.0, %v1030
      %1032 = vmatmul.bf16.gmra.mxu0 %v724
      %v1033 = vpop.f32.mrf.mxu0
      %v1034 = vadd.f32 0.0, %v1033
      %v1035 = vpop.f32.mrf.mxu0
      %v1036 = vadd.f32 0.0, %v1035
      %1037 = vmatmul.bf16.gmra.mxu0 %v727
      %v1038 = vpop.f32.mrf.mxu0
      %v1039 = vadd.f32 0.0, %v1038
      %v1040 = vpop.f32.mrf.mxu0
      %v1041 = vadd.f32 0.0, %v1040
      %1042 = vmatmul.bf16.gmra.mxu0 %v730
      %v1043 = vpop.f32.mrf.mxu0
      %v1044 = vadd.f32 0.0, %v1043
      %v1045 = vpop.f32.mrf.mxu0
      %v1046 = vadd.f32 0.0, %v1045
      %1047 = vmatmul.bf16.gmra.mxu0 %v733
      %v1048 = vpop.f32.mrf.mxu0
      %v1049 = vadd.f32 0.0, %v1048
      %v1050 = vpop.f32.mrf.mxu0
      %v1051 = vadd.f32 0.0, %v1050
      %1052 = vmatmul.bf16.gmra.mxu0 %v736
      %v1053 = vpop.f32.mrf.mxu0
      %v1054 = vadd.f32 0.0, %v1053
      %v1055 = vpop.f32.mrf.mxu0
      %v1056 = vadd.f32 0.0, %v1055
      %1057 = vmatmul.bf16.gmra.mxu0 %v739
      %v1058 = vpop.f32.mrf.mxu0
      %v1059 = vadd.f32 0.0, %v1058
      %v1060 = vpop.f32.mrf.mxu0
      %v1061 = vadd.f32 0.0, %v1060
      %1062 = vmatmul.bf16.gmra.mxu0 %v742
      %v1063 = vpop.f32.mrf.mxu0
      %v1064 = vadd.f32 0.0, %v1063
      %v1065 = vpop.f32.mrf.mxu0
      %v1066 = vadd.f32 0.0, %v1065
      %1067 = vmatmul.bf16.gmra.mxu0 %v745
      %v1068 = vpop.f32.mrf.mxu0
      %v1069 = vadd.f32 0.0, %v1068
      %v1070 = vpop.f32.mrf.mxu0
      %v1071 = vadd.f32 0.0, %v1070
      %1072 = vmatmul.bf16.gmra.mxu0 %v748
      %v1073 = vpop.f32.mrf.mxu0
      %v1074 = vadd.f32 0.0, %v1073
      %v1075 = vpop.f32.mrf.mxu0
      %v1076 = vadd.f32 0.0, %v1075
      %1077 = vmatmul.bf16.gmra.mxu0 %v751
      %v1078 = vpop.f32.mrf.mxu0
      %v1079 = vadd.f32 0.0, %v1078
      %v1080 = vpop.f32.mrf.mxu0
      %v1081 = vadd.f32 0.0, %v1080
      %1082 = vmatmul.bf16.gmra.mxu0 %v754
      %v1083 = vpop.f32.mrf.mxu0
      %v1084 = vadd.f32 0.0, %v1083
      %v1085 = vpop.f32.mrf.mxu0
      %v1086 = vadd.f32 0.0, %v1085
      %1087 = vmatmul.bf16.gmra.mxu0 %v757
      %v1088 = vpop.f32.mrf.mxu0
      %v1089 = vadd.f32 0.0, %v1088
      %v1090 = vpop.f32.mrf.mxu0
      %v1091 = vadd.f32 0.0, %v1090
      %1092 = vmatmul.bf16.gmra.mxu0 %v760
      %v1093 = vpop.f32.mrf.mxu0
      %v1094 = vadd.f32 0.0, %v1093
      %v1095 = vpop.f32.mrf.mxu0
      %v1096 = vadd.f32 0.0, %v1095
      %1097 = vmatmul.bf16.gmra.mxu0 %v763
      %v1098 = vpop.f32.mrf.mxu0
      %v1099 = vadd.f32 0.0, %v1098
      %v1100 = vpop.f32.mrf.mxu0
      %v1101 = vadd.f32 0.0, %v1100
      %1102 = vmatmul.bf16.gmra.mxu0 %v766
      %v1103 = vpop.f32.mrf.mxu0
      %v1104 = vadd.f32 0.0, %v1103
      %v1105 = vpop.f32.mrf.mxu0
      %v1106 = vadd.f32 0.0, %v1105
      %1107 = vmatmul.bf16.gmra.mxu0 %v769
      %v1108 = vpop.f32.mrf.mxu0
      %v1109 = vadd.f32 0.0, %v1108
      %v1110 = vpop.f32.mrf.mxu0
      %v1111 = vadd.f32 0.0, %v1110
      %1112 = vmatmul.bf16.gmra.mxu0 %v772
      %v1113 = vpop.f32.mrf.mxu0
      %v1114 = vadd.f32 0.0, %v1113
      %v1115 = vpop.f32.mrf.mxu0
      %v1116 = vadd.f32 0.0, %v1115
      %1117 = vmatmul.bf16.gmra.mxu0 %v775
      %v1118 = vpop.f32.mrf.mxu0
      %v1119 = vadd.f32 0.0, %v1118
      %v1120 = vpop.f32.mrf.mxu0
      %v1121 = vadd.f32 0.0, %v1120
      %1122 = vdwg.mxu0
      %1123 = vmatpush.bf16.msra.mxu0 %v961
      %1124 = vmatpush.bf16.msra.mxu0 %v960
      %1125 = vmatpush.bf16.msra.mxu0 %v959
      %1126 = vmatpush.bf16.msra.mxu0 %v958
      %1127 = vmatpush.bf16.msra.mxu0 %v957
      %1128 = vmatpush.bf16.msra.mxu0 %v956
      %1129 = vmatpush.bf16.msra.mxu0 %v955
      %1130 = vmatpush.bf16.msra.mxu0 %v954
      %1131 = vmatmul.bf16.gmra.mxu0 %v707
      %v1132 = vpop.f32.mrf.mxu0
      %v1133 = vadd.f32 %v1004, %v1132
      %v1134 = vpop.f32.mrf.mxu0
      %v1135 = vadd.f32 %v1006, %v1134
      %1136 = vmatmul.bf16.gmra.mxu0 %v710
      %v1137 = vpop.f32.mrf.mxu0
      %v1138 = vadd.f32 %v1009, %v1137
      %v1139 = vpop.f32.mrf.mxu0
      %v1140 = vadd.f32 %v1011, %v1139
      %1141 = vmatmul.bf16.gmra.mxu0 %v713
      %v1142 = vpop.f32.mrf.mxu0
      %v1143 = vadd.f32 %v1014, %v1142
      %v1144 = vpop.f32.mrf.mxu0
      %v1145 = vadd.f32 %v1016, %v1144
      %1146 = vmatmul.bf16.gmra.mxu0 %v716
      %v1147 = vpop.f32.mrf.mxu0
      %v1148 = vadd.f32 %v1019, %v1147
      %v1149 = vpop.f32.mrf.mxu0
      %v1150 = vadd.f32 %v1021, %v1149
      %1151 = vmatmul.bf16.gmra.mxu0 %v719
      %v1152 = vpop.f32.mrf.mxu0
      %v1153 = vadd.f32 %v1024, %v1152
      %v1154 = vpop.f32.mrf.mxu0
      %v1155 = vadd.f32 %v1026, %v1154
      %1156 = vmatmul.bf16.gmra.mxu0 %v722
      %v1157 = vpop.f32.mrf.mxu0
      %v1158 = vadd.f32 %v1029, %v1157
      %v1159 = vpop.f32.mrf.mxu0
      %v1160 = vadd.f32 %v1031, %v1159
      %1161 = vmatmul.bf16.gmra.mxu0 %v725
      %v1162 = vpop.f32.mrf.mxu0
      %v1163 = vadd.f32 %v1034, %v1162
      %v1164 = vpop.f32.mrf.mxu0
      %v1165 = vadd.f32 %v1036, %v1164
      %1166 = vmatmul.bf16.gmra.mxu0 %v728
      %v1167 = vpop.f32.mrf.mxu0
      %v1168 = vadd.f32 %v1039, %v1167
      %v1169 = vpop.f32.mrf.mxu0
      %v1170 = vadd.f32 %v1041, %v1169
      %1171 = vmatmul.bf16.gmra.mxu0 %v731
      %v1172 = vpop.f32.mrf.mxu0
      %v1173 = vadd.f32 %v1044, %v1172
      %v1174 = vpop.f32.mrf.mxu0
      %v1175 = vadd.f32 %v1046, %v1174
      %1176 = vmatmul.bf16.gmra.mxu0 %v734
      %v1177 = vpop.f32.mrf.mxu0
      %v1178 = vadd.f32 %v1049, %v1177
      %v1179 = vpop.f32.mrf.mxu0
      %v1180 = vadd.f32 %v1051, %v1179
      %1181 = vmatmul.bf16.gmra.mxu0 %v737
      %v1182 = vpop.f32.mrf.mxu0
      %v1183 = vadd.f32 %v1054, %v1182
      %v1184 = vpop.f32.mrf.mxu0
      %v1185 = vadd.f32 %v1056, %v1184
      %1186 = vmatmul.bf16.gmra.mxu0 %v740
      %v1187 = vpop.f32.mrf.mxu0
      %v1188 = vadd.f32 %v1059, %v1187
      %v1189 = vpop.f32.mrf.mxu0
      %v1190 = vadd.f32 %v1061, %v1189
      %1191 = vmatmul.bf16.gmra.mxu0 %v743
      %v1192 = vpop.f32.mrf.mxu0
      %v1193 = vadd.f32 %v1064, %v1192
      %v1194 = vpop.f32.mrf.mxu0
      %v1195 = vadd.f32 %v1066, %v1194
      %1196 = vmatmul.bf16.gmra.mxu0 %v746
      %v1197 = vpop.f32.mrf.mxu0
      %v1198 = vadd.f32 %v1069, %v1197
      %v1199 = vpop.f32.mrf.mxu0
      %v1200 = vadd.f32 %v1071, %v1199
      %1201 = vmatmul.bf16.gmra.mxu0 %v749
      %v1202 = vpop.f32.mrf.mxu0
      %v1203 = vadd.f32 %v1074, %v1202
      %v1204 = vpop.f32.mrf.mxu0
      %v1205 = vadd.f32 %v1076, %v1204
      %1206 = vmatmul.bf16.gmra.mxu0 %v752
      %v1207 = vpop.f32.mrf.mxu0
      %v1208 = vadd.f32 %v1079, %v1207
      %v1209 = vpop.f32.mrf.mxu0
      %v1210 = vadd.f32 %v1081, %v1209
      %1211 = vmatmul.bf16.gmra.mxu0 %v755
      %v1212 = vpop.f32.mrf.mxu0
      %v1213 = vadd.f32 %v1084, %v1212
      %v1214 = vpop.f32.mrf.mxu0
      %v1215 = vadd.f32 %v1086, %v1214
      %1216 = vmatmul.bf16.gmra.mxu0 %v758
      %v1217 = vpop.f32.mrf.mxu0
      %v1218 = vadd.f32 %v1089, %v1217
      %v1219 = vpop.f32.mrf.mxu0
      %v1220 = vadd.f32 %v1091, %v1219
      %1221 = vmatmul.bf16.gmra.mxu0 %v761
      %v1222 = vpop.f32.mrf.mxu0
      %v1223 = vadd.f32 %v1094, %v1222
      %v1224 = vpop.f32.mrf.mxu0
      %v1225 = vadd.f32 %v1096, %v1224
      %1226 = vmatmul.bf16.gmra.mxu0 %v764
      %v1227 = vpop.f32.mrf.mxu0
      %v1228 = vadd.f32 %v1099, %v1227
      %v1229 = vpop.f32.mrf.mxu0
      %v1230 = vadd.f32 %v1101, %v1229
      %1231 = vmatmul.bf16.gmra.mxu0 %v767
      %v1232 = vpop.f32.mrf.mxu0
      %v1233 = vadd.f32 %v1104, %v1232
      %v1234 = vpop.f32.mrf.mxu0
      %v1235 = vadd.f32 %v1106, %v1234
      %1236 = vmatmul.bf16.gmra.mxu0 %v770
      %v1237 = vpop.f32.mrf.mxu0
      %v1238 = vadd.f32 %v1109, %v1237
      %v1239 = vpop.f32.mrf.mxu0
      %v1240 = vadd.f32 %v1111, %v1239
      %1241 = vmatmul.bf16.gmra.mxu0 %v773
      %v1242 = vpop.f32.mrf.mxu0
      %v1243 = vadd.f32 %v1114, %v1242
      %v1244 = vpop.f32.mrf.mxu0
      %v1245 = vadd.f32 %v1116, %v1244
      %1246 = vmatmul.bf16.gmra.mxu0 %v776
      %v1247 = vpop.f32.mrf.mxu0
      %v1248 = vadd.f32 %v1119, %v1247
      %v1249 = vpop.f32.mrf.mxu0
      %v1250 = vadd.f32 %v1121, %v1249
      %1251 = vdwg.mxu0
      %1252 = vmatpush.bf16.msra.mxu0 %v969
      %1253 = vmatpush.bf16.msra.mxu0 %v968
      %1254 = vmatpush.bf16.msra.mxu0 %v967
      %1255 = vmatpush.bf16.msra.mxu0 %v966
      %1256 = vmatpush.bf16.msra.mxu0 %v965
      %1257 = vmatpush.bf16.msra.mxu0 %v964
      %1258 = vmatpush.bf16.msra.mxu0 %v963
      %1259 = vmatpush.bf16.msra.mxu0 %v962
      %1260 = vmatmul.bf16.gmra.mxu0 %v708
      %v1261 = vpop.f32.mrf.mxu0
      %v1262 = vadd.f32 %v1133, %v1261
      %v1263 = vpop.f32.mrf.mxu0
      %v1264 = vadd.f32 %v1135, %v1263
      %1265 = vmatmul.bf16.gmra.mxu0 %v711
      %v1266 = vpop.f32.mrf.mxu0
      %v1267 = vadd.f32 %v1138, %v1266
      %v1268 = vpop.f32.mrf.mxu0
      %v1269 = vadd.f32 %v1140, %v1268
      %1270 = vmatmul.bf16.gmra.mxu0 %v714
      %v1271 = vpop.f32.mrf.mxu0
      %v1272 = vadd.f32 %v1143, %v1271
      %v1273 = vpop.f32.mrf.mxu0
      %v1274 = vadd.f32 %v1145, %v1273
      %1275 = vmatmul.bf16.gmra.mxu0 %v717
      %v1276 = vpop.f32.mrf.mxu0
      %v1277 = vadd.f32 %v1148, %v1276
      %v1278 = vpop.f32.mrf.mxu0
      %v1279 = vadd.f32 %v1150, %v1278
      %1280 = vmatmul.bf16.gmra.mxu0 %v720
      %v1281 = vpop.f32.mrf.mxu0
      %v1282 = vadd.f32 %v1153, %v1281
      %v1283 = vpop.f32.mrf.mxu0
      %v1284 = vadd.f32 %v1155, %v1283
      %1285 = vmatmul.bf16.gmra.mxu0 %v723
      %v1286 = vpop.f32.mrf.mxu0
      %v1287 = vadd.f32 %v1158, %v1286
      %v1288 = vpop.f32.mrf.mxu0
      %v1289 = vadd.f32 %v1160, %v1288
      %1290 = vmatmul.bf16.gmra.mxu0 %v726
      %v1291 = vpop.f32.mrf.mxu0
      %v1292 = vadd.f32 %v1163, %v1291
      %v1293 = vpop.f32.mrf.mxu0
      %v1294 = vadd.f32 %v1165, %v1293
      %1295 = vmatmul.bf16.gmra.mxu0 %v729
      %v1296 = vpop.f32.mrf.mxu0
      %v1297 = vadd.f32 %v1168, %v1296
      %v1298 = vpop.f32.mrf.mxu0
      %v1299 = vadd.f32 %v1170, %v1298
      %1300 = vmatmul.bf16.gmra.mxu0 %v732
      %v1301 = vpop.f32.mrf.mxu0
      %v1302 = vadd.f32 %v1173, %v1301
      %v1303 = vpop.f32.mrf.mxu0
      %v1304 = vadd.f32 %v1175, %v1303
      %1305 = vmatmul.bf16.gmra.mxu0 %v735
      %v1306 = vpop.f32.mrf.mxu0
      %v1307 = vadd.f32 %v1178, %v1306
      %v1308 = vpop.f32.mrf.mxu0
      %v1309 = vadd.f32 %v1180, %v1308
      %1310 = vmatmul.bf16.gmra.mxu0 %v738
      %v1311 = vpop.f32.mrf.mxu0
      %v1312 = vadd.f32 %v1183, %v1311
      %v1313 = vpop.f32.mrf.mxu0
      %v1314 = vadd.f32 %v1185, %v1313
      %1315 = vmatmul.bf16.gmra.mxu0 %v741
      %v1316 = vpop.f32.mrf.mxu0
      %v1317 = vadd.f32 %v1188, %v1316
      %v1318 = vpop.f32.mrf.mxu0
      %v1319 = vadd.f32 %v1190, %v1318
      %1320 = vmatmul.bf16.gmra.mxu0 %v744
      %v1321 = vpop.f32.mrf.mxu0
      %v1322 = vadd.f32 %v1193, %v1321
      %v1323 = vpop.f32.mrf.mxu0
      %v1324 = vadd.f32 %v1195, %v1323
      %1325 = vmatmul.bf16.gmra.mxu0 %v747
      %v1326 = vpop.f32.mrf.mxu0
      %v1327 = vadd.f32 %v1198, %v1326
      %v1328 = vpop.f32.mrf.mxu0
      %v1329 = vadd.f32 %v1200, %v1328
      %1330 = vmatmul.bf16.gmra.mxu0 %v750
      %v1331 = vpop.f32.mrf.mxu0
      %v1332 = vadd.f32 %v1203, %v1331
      %v1333 = vpop.f32.mrf.mxu0
      %v1334 = vadd.f32 %v1205, %v1333
      %1335 = vmatmul.bf16.gmra.mxu0 %v753
      %v1336 = vpop.f32.mrf.mxu0
      %v1337 = vadd.f32 %v1208, %v1336
      %v1338 = vpop.f32.mrf.mxu0
      %v1339 = vadd.f32 %v1210, %v1338
      %1340 = vmatmul.bf16.gmra.mxu0 %v756
      %v1341 = vpop.f32.mrf.mxu0
      %v1342 = vadd.f32 %v1213, %v1341
      %v1343 = vpop.f32.mrf.mxu0
      %v1344 = vadd.f32 %v1215, %v1343
      %1345 = vmatmul.bf16.gmra.mxu0 %v759
      %v1346 = vpop.f32.mrf.mxu0
      %v1347 = vadd.f32 %v1218, %v1346
      %v1348 = vpop.f32.mrf.mxu0
      %v1349 = vadd.f32 %v1220, %v1348
      %1350 = vmatmul.bf16.gmra.mxu0 %v762
      %v1351 = vpop.f32.mrf.mxu0
      %v1352 = vadd.f32 %v1223, %v1351
      %v1353 = vpop.f32.mrf.mxu0
      %v1354 = vadd.f32 %v1225, %v1353
      %1355 = vmatmul.bf16.gmra.mxu0 %v765
      %v1356 = vpop.f32.mrf.mxu0
      %v1357 = vadd.f32 %v1228, %v1356
      %v1358 = vpop.f32.mrf.mxu0
      %v1359 = vadd.f32 %v1230, %v1358
      %1360 = vmatmul.bf16.gmra.mxu0 %v768
      %v1361 = vpop.f32.mrf.mxu0
      %v1362 = vadd.f32 %v1233, %v1361
      %v1363 = vpop.f32.mrf.mxu0
      %v1364 = vadd.f32 %v1235, %v1363
      %1365 = vmatmul.bf16.gmra.mxu0 %v771
      %v1366 = vpop.f32.mrf.mxu0
      %v1367 = vadd.f32 %v1238, %v1366
      %v1368 = vpop.f32.mrf.mxu0
      %v1369 = vadd.f32 %v1240, %v1368
      %1370 = vmatmul.bf16.gmra.mxu0 %v774
      %v1371 = vpop.f32.mrf.mxu0
      %v1372 = vadd.f32 %v1243, %v1371
      %v1373 = vpop.f32.mrf.mxu0
      %v1374 = vadd.f32 %v1245, %v1373
      %1375 = vmatmul.bf16.gmra.mxu0 %v777
      %v1376 = vpop.f32.mrf.mxu0
      %v1377 = vadd.f32 %v1248, %v1376
      %v1378 = vpop.f32.mrf.mxu0
      %v1379 = vadd.f32 %v1250, %v1378
      %1380 = vdwg.mxu0
      %vm1381 = vcmp.gt.f32.partialorder %v1262, 0.0
      %vm1382 = vcmp.gt.f32.partialorder %v1264, 0.0
      %vm1383 = vcmp.gt.f32.partialorder %v1267, 0.0
      %vm1384 = vcmp.gt.f32.partialorder %v1269, 0.0
      %vm1385 = vcmp.gt.f32.partialorder %v1272, 0.0
      %vm1386 = vcmp.gt.f32.partialorder %v1274, 0.0
      %vm1387 = vcmp.gt.f32.partialorder %v1277, 0.0
      %vm1388 = vcmp.gt.f32.partialorder %v1279, 0.0
      %vm1389 = vcmp.gt.f32.partialorder %v1282, 0.0
      %vm1390 = vcmp.gt.f32.partialorder %v1284, 0.0
      %vm1391 = vcmp.gt.f32.partialorder %v1287, 0.0
      %vm1392 = vcmp.gt.f32.partialorder %v1289, 0.0
      %vm1393 = vcmp.gt.f32.partialorder %v1292, 0.0
      %vm1394 = vcmp.gt.f32.partialorder %v1294, 0.0
      %vm1395 = vcmp.gt.f32.partialorder %v1297, 0.0
      %vm1396 = vcmp.gt.f32.partialorder %v1299, 0.0
      %vm1397 = vcmp.gt.f32.partialorder %v1302, 0.0
      %vm1398 = vcmp.gt.f32.partialorder %v1304, 0.0
      %vm1399 = vcmp.gt.f32.partialorder %v1307, 0.0
      %vm1400 = vcmp.gt.f32.partialorder %v1309, 0.0
      %vm1401 = vcmp.gt.f32.partialorder %v1312, 0.0
      %vm1402 = vcmp.gt.f32.partialorder %v1314, 0.0
      %vm1403 = vcmp.gt.f32.partialorder %v1317, 0.0
      %vm1404 = vcmp.gt.f32.partialorder %v1319, 0.0
      %vm1405 = vcmp.gt.f32.partialorder %v1322, 0.0
      %vm1406 = vcmp.gt.f32.partialorder %v1324, 0.0
      %vm1407 = vcmp.gt.f32.partialorder %v1327, 0.0
      %vm1408 = vcmp.gt.f32.partialorder %v1329, 0.0
      %vm1409 = vcmp.gt.f32.partialorder %v1332, 0.0
      %vm1410 = vcmp.gt.f32.partialorder %v1334, 0.0
      %vm1411 = vcmp.gt.f32.partialorder %v1337, 0.0
      %vm1412 = vcmp.gt.f32.partialorder %v1339, 0.0
      %vm1413 = vcmp.gt.f32.partialorder %v1342, 0.0
      %vm1414 = vcmp.gt.f32.partialorder %v1344, 0.0
      %vm1415 = vcmp.gt.f32.partialorder %v1347, 0.0
      %vm1416 = vcmp.gt.f32.partialorder %v1349, 0.0
      %vm1417 = vcmp.gt.f32.partialorder %v1352, 0.0
      %vm1418 = vcmp.gt.f32.partialorder %v1354, 0.0
      %vm1419 = vcmp.gt.f32.partialorder %v1357, 0.0
      %vm1420 = vcmp.gt.f32.partialorder %v1359, 0.0
      %vm1421 = vcmp.gt.f32.partialorder %v1362, 0.0
      %vm1422 = vcmp.gt.f32.partialorder %v1364, 0.0
      %vm1423 = vcmp.gt.f32.partialorder %v1367, 0.0
      %vm1424 = vcmp.gt.f32.partialorder %v1369, 0.0
      %vm1425 = vcmp.gt.f32.partialorder %v1372, 0.0
      %vm1426 = vcmp.gt.f32.partialorder %v1374, 0.0
      %vm1427 = vcmp.gt.f32.partialorder %v1377, 0.0
      %vm1428 = vcmp.gt.f32.partialorder %v1379, 0.0
      %v1429 = vmul.f32 %v1262, 0.2
      %v1430 = vmul.f32 %v1264, 0.2
      %v1431 = vmul.f32 %v1267, 0.2
      %v1432 = vmul.f32 %v1269, 0.2
      %v1433 = vmul.f32 %v1272, 0.2
      %v1434 = vmul.f32 %v1274, 0.2
      %v1435 = vmul.f32 %v1277, 0.2
      %v1436 = vmul.f32 %v1279, 0.2
      %v1437 = vmul.f32 %v1282, 0.2
      %v1438 = vmul.f32 %v1284, 0.2
      %v1439 = vmul.f32 %v1287, 0.2
      %v1440 = vmul.f32 %v1289, 0.2
      %v1441 = vmul.f32 %v1292, 0.2
      %v1442 = vmul.f32 %v1294, 0.2
      %v1443 = vmul.f32 %v1297, 0.2
      %v1444 = vmul.f32 %v1299, 0.2
      %v1445 = vmul.f32 %v1302, 0.2
      %v1446 = vmul.f32 %v1304, 0.2
      %v1447 = vmul.f32 %v1307, 0.2
      %v1448 = vmul.f32 %v1309, 0.2
      %v1449 = vmul.f32 %v1312, 0.2
      %v1450 = vmul.f32 %v1314, 0.2
      %v1451 = vmul.f32 %v1317, 0.2
      %v1452 = vmul.f32 %v1319, 0.2
      %v1453 = vmul.f32 %v1322, 0.2
      %v1454 = vmul.f32 %v1324, 0.2
      %v1455 = vmul.f32 %v1327, 0.2
      %v1456 = vmul.f32 %v1329, 0.2
      %v1457 = vmul.f32 %v1332, 0.2
      %v1458 = vmul.f32 %v1334, 0.2
      %v1459 = vmul.f32 %v1337, 0.2
      %v1460 = vmul.f32 %v1339, 0.2
      %v1461 = vmul.f32 %v1342, 0.2
      %v1462 = vmul.f32 %v1344, 0.2
      %v1463 = vmul.f32 %v1347, 0.2
      %v1464 = vmul.f32 %v1349, 0.2
      %v1465 = vmul.f32 %v1352, 0.2
      %v1466 = vmul.f32 %v1354, 0.2
      %v1467 = vmul.f32 %v1357, 0.2
      %v1468 = vmul.f32 %v1359, 0.2
      %v1469 = vmul.f32 %v1362, 0.2
      %v1470 = vmul.f32 %v1364, 0.2
      %v1471 = vmul.f32 %v1367, 0.2
      %v1472 = vmul.f32 %v1369, 0.2
      %v1473 = vmul.f32 %v1372, 0.2
      %v1474 = vmul.f32 %v1374, 0.2
      %v1475 = vmul.f32 %v1377, 0.2
      %v1476 = vmul.f32 %v1379, 0.2
      %v1477 = vsel %vm1381, %v1262, %v1429
      %v1478 = vsel %vm1382, %v1264, %v1430
      %v1479 = vsel %vm1383, %v1267, %v1431
      %v1480 = vsel %vm1384, %v1269, %v1432
      %v1481 = vsel %vm1385, %v1272, %v1433
      %v1482 = vsel %vm1386, %v1274, %v1434
      %v1483 = vsel %vm1387, %v1277, %v1435
      %v1484 = vsel %vm1388, %v1279, %v1436
      %v1485 = vsel %vm1389, %v1282, %v1437
      %v1486 = vsel %vm1390, %v1284, %v1438
      %v1487 = vsel %vm1391, %v1287, %v1439
      %v1488 = vsel %vm1392, %v1289, %v1440
      %v1489 = vsel %vm1393, %v1292, %v1441
      %v1490 = vsel %vm1394, %v1294, %v1442
      %v1491 = vsel %vm1395, %v1297, %v1443
      %v1492 = vsel %vm1396, %v1299, %v1444
      %v1493 = vsel %vm1397, %v1302, %v1445
      %v1494 = vsel %vm1398, %v1304, %v1446
      %v1495 = vsel %vm1399, %v1307, %v1447
      %v1496 = vsel %vm1400, %v1309, %v1448
      %v1497 = vsel %vm1401, %v1312, %v1449
      %v1498 = vsel %vm1402, %v1314, %v1450
      %v1499 = vsel %vm1403, %v1317, %v1451
      %v1500 = vsel %vm1404, %v1319, %v1452
      %v1501 = vsel %vm1405, %v1322, %v1453
      %v1502 = vsel %vm1406, %v1324, %v1454
      %v1503 = vsel %vm1407, %v1327, %v1455
      %v1504 = vsel %vm1408, %v1329, %v1456
      %v1505 = vsel %vm1409, %v1332, %v1457
      %v1506 = vsel %vm1410, %v1334, %v1458
      %v1507 = vsel %vm1411, %v1337, %v1459
      %v1508 = vsel %vm1412, %v1339, %v1460
      %v1509 = vsel %vm1413, %v1342, %v1461
      %v1510 = vsel %vm1414, %v1344, %v1462
      %v1511 = vsel %vm1415, %v1347, %v1463
      %v1512 = vsel %vm1416, %v1349, %v1464
      %v1513 = vsel %vm1417, %v1352, %v1465
      %v1514 = vsel %vm1418, %v1354, %v1466
      %v1515 = vsel %vm1419, %v1357, %v1467
      %v1516 = vsel %vm1420, %v1359, %v1468
      %v1517 = vsel %vm1421, %v1362, %v1469
      %v1518 = vsel %vm1422, %v1364, %v1470
      %v1519 = vsel %vm1423, %v1367, %v1471
      %v1520 = vsel %vm1424, %v1369, %v1472
      %v1521 = vsel %vm1425, %v1372, %v1473
      %v1522 = vsel %vm1426, %v1374, %v1474
      %v1523 = vsel %vm1427, %v1377, %v1475
      %v1524 = vsel %vm1428, %v1379, %v1476
      %v1525 = vpack.c.bf16 %v1478, %v1477
      %v1526 = vpack.c.bf16 %v1480, %v1479
      %v1527 = vpack.c.bf16 %v1482, %v1481
      %v1528 = vpack.c.bf16 %v1484, %v1483
      %v1529 = vpack.c.bf16 %v1486, %v1485
      %v1530 = vpack.c.bf16 %v1488, %v1487
      %v1531 = vpack.c.bf16 %v1490, %v1489
      %v1532 = vpack.c.bf16 %v1492, %v1491
      %v1533 = vpack.c.bf16 %v1494, %v1493
      %v1534 = vpack.c.bf16 %v1496, %v1495
      %v1535 = vpack.c.bf16 %v1498, %v1497
      %v1536 = vpack.c.bf16 %v1500, %v1499
      %v1537 = vpack.c.bf16 %v1502, %v1501
      %v1538 = vpack.c.bf16 %v1504, %v1503
      %v1539 = vpack.c.bf16 %v1506, %v1505
      %v1540 = vpack.c.bf16 %v1508, %v1507
      %v1541 = vpack.c.bf16 %v1510, %v1509
      %v1542 = vpack.c.bf16 %v1512, %v1511
      %v1543 = vpack.c.bf16 %v1514, %v1513
      %v1544 = vpack.c.bf16 %v1516, %v1515
      %v1545 = vpack.c.bf16 %v1518, %v1517
      %v1546 = vpack.c.bf16 %v1520, %v1519
      %v1547 = vpack.c.bf16 %v1522, %v1521
      %v1548 = vpack.c.bf16 %v1524, %v1523
      %v1549 = vld [vmem:[%s218] sm:$0xf]
      %v1550 = vld [vmem:[%s218 + $0x4] sm:$0xf]
      %v1551 = vld [vmem:[%s218 + $0x8] sm:$0xf]
      %v1552 = vld [vmem:[%s218 + $0xc] sm:$0xf]
      %v1553 = vld [vmem:[%s218 + $0x10] sm:$0xf]
      %v1554 = vld [vmem:[%s218 + $0x14] sm:$0xf]
      %v1555 = vld [vmem:[%s218 + $0x18] sm:$0xf]
      %v1556 = vld [vmem:[%s218 + $0x1c] sm:$0xf]
      %v1557 = vld [vmem:[%s218 + $0x20] sm:$0xf]
      %v1558 = vld [vmem:[%s218 + $0x24] sm:$0xf]
      %v1559 = vld [vmem:[%s218 + $0x28] sm:$0xf]
      %v1560 = vld [vmem:[%s218 + $0x2c] sm:$0xf]
      %v1561 = vld [vmem:[%s218 + $0x30] sm:$0xf]
      %v1562 = vld [vmem:[%s218 + $0x34] sm:$0xf]
      %v1563 = vld [vmem:[%s218 + $0x38] sm:$0xf]
      %v1564 = vld [vmem:[%s218 + $0x3c] sm:$0xf]
      %v1565 = vld [vmem:[%s221] sm:$0x1]
      %v1567 = vperm.slane %v1565, 0
      %v1585 = vunpack.c.l.b16 %v1549
      %v1586 = vunpack.c.l.b16 %v1550
      %v1587 = vunpack.c.l.b16 %v1551
      %v1588 = vunpack.c.l.b16 %v1552
      %v1589 = vunpack.c.l.b16 %v1553
      %v1590 = vunpack.c.l.b16 %v1554
      %v1591 = vunpack.c.l.b16 %v1555
      %v1592 = vunpack.c.l.b16 %v1556
      %v1593 = vunpack.c.l.b16 %v1557
      %v1594 = vunpack.c.l.b16 %v1558
      %v1595 = vunpack.c.l.b16 %v1559
      %v1596 = vunpack.c.l.b16 %v1560
      %v1597 = vunpack.c.l.b16 %v1561
      %v1598 = vunpack.c.l.b16 %v1562
      %v1599 = vunpack.c.l.b16 %v1563
      %v1600 = vunpack.c.l.b16 %v1564
      %v1601 = vpack.c.b16 %v1586, %v1585
      %v1602 = vpack.c.b16 %v1588, %v1587
      %v1603 = vpack.c.b16 %v1590, %v1589
      %v1604 = vpack.c.b16 %v1592, %v1591
      %v1605 = vpack.c.b16 %v1594, %v1593
      %v1606 = vpack.c.b16 %v1596, %v1595
      %v1607 = vpack.c.b16 %v1598, %v1597
      %v1608 = vpack.c.b16 %v1600, %v1599
      %1617 = vmatpush.bf16.msra.mxu0 %v1608
      %1618 = vmatpush.bf16.msra.mxu0 %v1607
      %1619 = vmatpush.bf16.msra.mxu0 %v1606
      %1620 = vmatpush.bf16.msra.mxu0 %v1605
      %1621 = vmatpush.bf16.msra.mxu0 %v1604
      %1622 = vmatpush.bf16.msra.mxu0 %v1603
      %1623 = vmatpush.bf16.msra.mxu0 %v1602
      %1624 = vmatpush.bf16.msra.mxu0 %v1601
      %1625 = vmatmul.bf16.gmra.mxu0 %v1525
      %v1626 = vpop.f32.mrf.mxu0
      %v1627 = vadd.f32 %v1567, %v1626
      %v1628 = vpop.f32.mrf.mxu0
      %v1629 = vadd.f32 %v1567, %v1628
      %1630 = vmatmul.bf16.gmra.mxu0 %v1526
      %v1631 = vpop.f32.mrf.mxu0
      %v1632 = vadd.f32 %v1567, %v1631
      %v1633 = vpop.f32.mrf.mxu0
      %v1634 = vadd.f32 %v1567, %v1633
      %1635 = vmatmul.bf16.gmra.mxu0 %v1527
      %v1636 = vpop.f32.mrf.mxu0
      %v1637 = vadd.f32 %v1567, %v1636
      %v1638 = vpop.f32.mrf.mxu0
      %v1639 = vadd.f32 %v1567, %v1638
      %1640 = vmatmul.bf16.gmra.mxu0 %v1528
      %v1641 = vpop.f32.mrf.mxu0
      %v1642 = vadd.f32 %v1567, %v1641
      %v1643 = vpop.f32.mrf.mxu0
      %v1644 = vadd.f32 %v1567, %v1643
      %1645 = vmatmul.bf16.gmra.mxu0 %v1529
      %v1646 = vpop.f32.mrf.mxu0
      %v1647 = vadd.f32 %v1567, %v1646
      %v1648 = vpop.f32.mrf.mxu0
      %v1649 = vadd.f32 %v1567, %v1648
      %1650 = vmatmul.bf16.gmra.mxu0 %v1530
      %v1651 = vpop.f32.mrf.mxu0
      %v1652 = vadd.f32 %v1567, %v1651
      %v1653 = vpop.f32.mrf.mxu0
      %v1654 = vadd.f32 %v1567, %v1653
      %1655 = vmatmul.bf16.gmra.mxu0 %v1531
      %v1656 = vpop.f32.mrf.mxu0
      %v1657 = vadd.f32 %v1567, %v1656
      %v1658 = vpop.f32.mrf.mxu0
      %v1659 = vadd.f32 %v1567, %v1658
      %1660 = vmatmul.bf16.gmra.mxu0 %v1532
      %v1661 = vpop.f32.mrf.mxu0
      %v1662 = vadd.f32 %v1567, %v1661
      %v1663 = vpop.f32.mrf.mxu0
      %v1664 = vadd.f32 %v1567, %v1663
      %1665 = vmatmul.bf16.gmra.mxu0 %v1533
      %v1666 = vpop.f32.mrf.mxu0
      %v1667 = vadd.f32 %v1567, %v1666
      %v1668 = vpop.f32.mrf.mxu0
      %v1669 = vadd.f32 %v1567, %v1668
      %1670 = vmatmul.bf16.gmra.mxu0 %v1534
      %v1671 = vpop.f32.mrf.mxu0
      %v1672 = vadd.f32 %v1567, %v1671
      %v1673 = vpop.f32.mrf.mxu0
      %v1674 = vadd.f32 %v1567, %v1673
      %1675 = vmatmul.bf16.gmra.mxu0 %v1535
      %v1676 = vpop.f32.mrf.mxu0
      %v1677 = vadd.f32 %v1567, %v1676
      %v1678 = vpop.f32.mrf.mxu0
      %v1679 = vadd.f32 %v1567, %v1678
      %1680 = vmatmul.bf16.gmra.mxu0 %v1536
      %v1681 = vpop.f32.mrf.mxu0
      %v1682 = vadd.f32 %v1567, %v1681
      %v1683 = vpop.f32.mrf.mxu0
      %v1684 = vadd.f32 %v1567, %v1683
      %1685 = vmatmul.bf16.gmra.mxu0 %v1537
      %v1686 = vpop.f32.mrf.mxu0
      %v1687 = vadd.f32 %v1567, %v1686
      %v1688 = vpop.f32.mrf.mxu0
      %v1689 = vadd.f32 %v1567, %v1688
      %1690 = vmatmul.bf16.gmra.mxu0 %v1538
      %v1691 = vpop.f32.mrf.mxu0
      %v1692 = vadd.f32 %v1567, %v1691
      %v1693 = vpop.f32.mrf.mxu0
      %v1694 = vadd.f32 %v1567, %v1693
      %1695 = vmatmul.bf16.gmra.mxu0 %v1539
      %v1696 = vpop.f32.mrf.mxu0
      %v1697 = vadd.f32 %v1567, %v1696
      %v1698 = vpop.f32.mrf.mxu0
      %v1699 = vadd.f32 %v1567, %v1698
      %1700 = vmatmul.bf16.gmra.mxu0 %v1540
      %v1701 = vpop.f32.mrf.mxu0
      %v1702 = vadd.f32 %v1567, %v1701
      %v1703 = vpop.f32.mrf.mxu0
      %v1704 = vadd.f32 %v1567, %v1703
      %1705 = vmatmul.bf16.gmra.mxu0 %v1541
      %v1706 = vpop.f32.mrf.mxu0
      %v1707 = vadd.f32 %v1567, %v1706
      %v1708 = vpop.f32.mrf.mxu0
      %v1709 = vadd.f32 %v1567, %v1708
      %1710 = vmatmul.bf16.gmra.mxu0 %v1542
      %v1711 = vpop.f32.mrf.mxu0
      %v1712 = vadd.f32 %v1567, %v1711
      %v1713 = vpop.f32.mrf.mxu0
      %v1714 = vadd.f32 %v1567, %v1713
      %1715 = vmatmul.bf16.gmra.mxu0 %v1543
      %v1716 = vpop.f32.mrf.mxu0
      %v1717 = vadd.f32 %v1567, %v1716
      %v1718 = vpop.f32.mrf.mxu0
      %v1719 = vadd.f32 %v1567, %v1718
      %1720 = vmatmul.bf16.gmra.mxu0 %v1544
      %v1721 = vpop.f32.mrf.mxu0
      %v1722 = vadd.f32 %v1567, %v1721
      %v1723 = vpop.f32.mrf.mxu0
      %v1724 = vadd.f32 %v1567, %v1723
      %1725 = vmatmul.bf16.gmra.mxu0 %v1545
      %v1726 = vpop.f32.mrf.mxu0
      %v1727 = vadd.f32 %v1567, %v1726
      %v1728 = vpop.f32.mrf.mxu0
      %v1729 = vadd.f32 %v1567, %v1728
      %1730 = vmatmul.bf16.gmra.mxu0 %v1546
      %v1731 = vpop.f32.mrf.mxu0
      %v1732 = vadd.f32 %v1567, %v1731
      %v1733 = vpop.f32.mrf.mxu0
      %v1734 = vadd.f32 %v1567, %v1733
      %1735 = vmatmul.bf16.gmra.mxu0 %v1547
      %v1736 = vpop.f32.mrf.mxu0
      %v1737 = vadd.f32 %v1567, %v1736
      %v1738 = vpop.f32.mrf.mxu0
      %v1739 = vadd.f32 %v1567, %v1738
      %1740 = vmatmul.bf16.gmra.mxu0 %v1548
      %v1741 = vpop.f32.mrf.mxu0
      %v1742 = vadd.f32 %v1567, %v1741
      %v1743 = vpop.f32.mrf.mxu0
      %v1744 = vadd.f32 %v1567, %v1743
      %1745 = vdwg.mxu0
      %v1746 = vpack.c.bf16 %v1627, %v1627
      %v1747 = vpack.c.bf16 %v1629, %v1629
      %v1748 = vpack.c.bf16 %v1632, %v1632
      %v1749 = vpack.c.bf16 %v1634, %v1634
      %v1750 = vpack.c.bf16 %v1637, %v1637
      %v1751 = vpack.c.bf16 %v1639, %v1639
      %v1752 = vpack.c.bf16 %v1642, %v1642
      %v1753 = vpack.c.bf16 %v1644, %v1644
      %v1754 = vpack.c.bf16 %v1647, %v1647
      %v1755 = vpack.c.bf16 %v1649, %v1649
      %v1756 = vpack.c.bf16 %v1652, %v1652
      %v1757 = vpack.c.bf16 %v1654, %v1654
      %v1758 = vpack.c.bf16 %v1657, %v1657
      %v1759 = vpack.c.bf16 %v1659, %v1659
      %v1760 = vpack.c.bf16 %v1662, %v1662
      %v1761 = vpack.c.bf16 %v1664, %v1664
      %v1762 = vpack.c.bf16 %v1667, %v1667
      %v1763 = vpack.c.bf16 %v1669, %v1669
      %v1764 = vpack.c.bf16 %v1672, %v1672
      %v1765 = vpack.c.bf16 %v1674, %v1674
      %v1766 = vpack.c.bf16 %v1677, %v1677
      %v1767 = vpack.c.bf16 %v1679, %v1679
      %v1768 = vpack.c.bf16 %v1682, %v1682
      %v1769 = vpack.c.bf16 %v1684, %v1684
      %v1770 = vpack.c.bf16 %v1687, %v1687
      %v1771 = vpack.c.bf16 %v1689, %v1689
      %v1772 = vpack.c.bf16 %v1692, %v1692
      %v1773 = vpack.c.bf16 %v1694, %v1694
      %v1774 = vpack.c.bf16 %v1697, %v1697
      %v1775 = vpack.c.bf16 %v1699, %v1699
      %v1776 = vpack.c.bf16 %v1702, %v1702
      %v1777 = vpack.c.bf16 %v1704, %v1704
      %v1778 = vpack.c.bf16 %v1707, %v1707
      %v1779 = vpack.c.bf16 %v1709, %v1709
      %v1780 = vpack.c.bf16 %v1712, %v1712
      %v1781 = vpack.c.bf16 %v1714, %v1714
      %v1782 = vpack.c.bf16 %v1717, %v1717
      %v1783 = vpack.c.bf16 %v1719, %v1719
      %v1784 = vpack.c.bf16 %v1722, %v1722
      %v1785 = vpack.c.bf16 %v1724, %v1724
      %v1786 = vpack.c.bf16 %v1727, %v1727
      %v1787 = vpack.c.bf16 %v1729, %v1729
      %v1788 = vpack.c.bf16 %v1732, %v1732
      %v1789 = vpack.c.bf16 %v1734, %v1734
      %v1790 = vpack.c.bf16 %v1737, %v1737
      %v1791 = vpack.c.bf16 %v1739, %v1739
      %v1792 = vpack.c.bf16 %v1742, %v1742
      %v1793 = vpack.c.bf16 %v1744, %v1744
      %1794 = vst [vmem:[#allocation2] sm:$0xf] %v1746
      %1795 = vst [vmem:[#allocation2 + $0x4] sm:$0xf] %v1747
      %1796 = vst [vmem:[#allocation2 + $0x8] sm:$0xf] %v1748
      %1797 = vst [vmem:[#allocation2 + $0xc] sm:$0xf] %v1749
      %1798 = vst [vmem:[#allocation2 + $0x10] sm:$0xf] %v1750
      %1799 = vst [vmem:[#allocation2 + $0x14] sm:$0xf] %v1751
      %1800 = vst [vmem:[#allocation2 + $0x18] sm:$0xf] %v1752
      %1801 = vst [vmem:[#allocation2 + $0x1c] sm:$0xf] %v1753
      %1802 = vst [vmem:[#allocation2 + $0x20] sm:$0xf] %v1754
      %1803 = vst [vmem:[#allocation2 + $0x24] sm:$0xf] %v1755
      %1804 = vst [vmem:[#allocation2 + $0x28] sm:$0xf] %v1756
      %1805 = vst [vmem:[#allocation2 + $0x2c] sm:$0xf] %v1757
      %1806 = vst [vmem:[#allocation2 + $0x30] sm:$0xf] %v1758
      %1807 = vst [vmem:[#allocation2 + $0x34] sm:$0xf] %v1759
      %1808 = vst [vmem:[#allocation2 + $0x38] sm:$0xf] %v1760
      %1809 = vst [vmem:[#allocation2 + $0x3c] sm:$0xf] %v1761
      %1810 = vst [vmem:[#allocation2 + $0x40] sm:$0xf] %v1762
      %1811 = vst [vmem:[#allocation2 + $0x44] sm:$0xf] %v1763
      %1812 = vst [vmem:[#allocation2 + $0x48] sm:$0xf] %v1764
      %1813 = vst [vmem:[#allocation2 + $0x4c] sm:$0xf] %v1765
      %1814 = vst [vmem:[#allocation2 + $0x50] sm:$0xf] %v1766
      %1815 = vst [vmem:[#allocation2 + $0x54] sm:$0xf] %v1767
      %1816 = vst [vmem:[#allocation2 + $0x58] sm:$0xf] %v1768
      %1817 = vst [vmem:[#allocation2 + $0x5c] sm:$0xf] %v1769
      %1818 = vst [vmem:[#allocation2 + $0x60] sm:$0xf] %v1770
      %1819 = vst [vmem:[#allocation2 + $0x64] sm:$0xf] %v1771
      %1820 = vst [vmem:[#allocation2 + $0x68] sm:$0xf] %v1772
      %1821 = vst [vmem:[#allocation2 + $0x6c] sm:$0xf] %v1773
      %1822 = vst [vmem:[#allocation2 + $0x70] sm:$0xf] %v1774
      %1823 = vst [vmem:[#allocation2 + $0x74] sm:$0xf] %v1775
      %1824 = vst [vmem:[#allocation2 + $0x78] sm:$0xf] %v1776
      %1825 = vst [vmem:[#allocation2 + $0x7c] sm:$0xf] %v1777
      %1826 = vst [vmem:[#allocation2 + $0x80] sm:$0xf] %v1778
      %1827 = vst [vmem:[#allocation2 + $0x84] sm:$0xf] %v1779
      %1828 = vst [vmem:[#allocation2 + $0x88] sm:$0xf] %v1780
      %1829 = vst [vmem:[#allocation2 + $0x8c] sm:$0xf] %v1781
      %1830 = vst [vmem:[#allocation2 + $0x90] sm:$0xf] %v1782
      %1831 = vst [vmem:[#allocation2 + $0x94] sm:$0xf] %v1783
      %1832 = vst [vmem:[#allocation2 + $0x98] sm:$0xf] %v1784
      %1833 = vst [vmem:[#allocation2 + $0x9c] sm:$0xf] %v1785
      %1834 = vst [vmem:[#allocation2 + $0xa0] sm:$0xf] %v1786
      %1835 = vst [vmem:[#allocation2 + $0xa4] sm:$0xf] %v1787
      %1836 = vst [vmem:[#allocation2 + $0xa8] sm:$0xf] %v1788
      %1837 = vst [vmem:[#allocation2 + $0xac] sm:$0xf] %v1789
      %1838 = vst [vmem:[#allocation2 + $0xb0] sm:$0xf] %v1790
      %1839 = vst [vmem:[#allocation2 + $0xb4] sm:$0xf] %v1791
      %1840 = vst [vmem:[#allocation2 + $0xb8] sm:$0xf] %v1792
      %1841 = vst [vmem:[#allocation2 + $0xbc] sm:$0xf] %v1793
      %1842 = vst [vmem:[%s4] sm:$0xff] %v1477
      %1843 = vst [vmem:[%s4 + $0x8] sm:$0xff] %v1478
      %1844 = vst [vmem:[%s4 + $0x10] sm:$0xff] %v1479
      %1845 = vst [vmem:[%s4 + $0x18] sm:$0xff] %v1480
      %1846 = vst [vmem:[%s4 + $0x20] sm:$0xff] %v1481
      %1847 = vst [vmem:[%s4 + $0x28] sm:$0xff] %v1482
      %1848 = vst [vmem:[%s4 + $0x30] sm:$0xff] %v1483
      %1849 = vst [vmem:[%s4 + $0x38] sm:$0xff] %v1484
      %1850 = vst [vmem:[%s4 + $0x40] sm:$0xff] %v1485
      %1851 = vst [vmem:[%s4 + $0x48] sm:$0xff] %v1486
      %1852 = vst [vmem:[%s4 + $0x50] sm:$0xff] %v1487
      %1853 = vst [vmem:[%s4 + $0x58] sm:$0xff] %v1488
      %1854 = vst [vmem:[%s4 + $0x60] sm:$0xff] %v1489
      %1855 = vst [vmem:[%s4 + $0x68] sm:$0xff] %v1490
      %1856 = vst [vmem:[%s4 + $0x70] sm:$0xff] %v1491
      %1857 = vst [vmem:[%s4 + $0x78] sm:$0xff] %v1492
      %1858 = vst [vmem:[%s4 + $0x80] sm:$0xff] %v1493
      %1859 = vst [vmem:[%s4 + $0x88] sm:$0xff] %v1494
      %1860 = vst [vmem:[%s4 + $0x90] sm:$0xff] %v1495
      %1861 = vst [vmem:[%s4 + $0x98] sm:$0xff] %v1496
      %1862 = vst [vmem:[%s4 + $0xa0] sm:$0xff] %v1497
      %1863 = vst [vmem:[%s4 + $0xa8] sm:$0xff] %v1498
      %1864 = vst [vmem:[%s4 + $0xb0] sm:$0xff] %v1499
      %1865 = vst [vmem:[%s4 + $0xb8] sm:$0xff] %v1500
      %1866 = vst [vmem:[%s4 + $0xc0] sm:$0xff] %v1501
      %1867 = vst [vmem:[%s4 + $0xc8] sm:$0xff] %v1502
      %1868 = vst [vmem:[%s4 + $0xd0] sm:$0xff] %v1503
      %1869 = vst [vmem:[%s4 + $0xd8] sm:$0xff] %v1504
      %1870 = vst [vmem:[%s4 + $0xe0] sm:$0xff] %v1505
      %1871 = vst [vmem:[%s4 + $0xe8] sm:$0xff] %v1506
      %1872 = vst [vmem:[%s4 + $0xf0] sm:$0xff] %v1507
      %1873 = vst [vmem:[%s4 + $0xf8] sm:$0xff] %v1508
      %1874 = vst [vmem:[%s4 + $0x100] sm:$0xff] %v1509
      %1875 = vst [vmem:[%s4 + $0x108] sm:$0xff] %v1510
      %1876 = vst [vmem:[%s4 + $0x110] sm:$0xff] %v1511
      %1877 = vst [vmem:[%s4 + $0x118] sm:$0xff] %v1512
      %1878 = vst [vmem:[%s4 + $0x120] sm:$0xff] %v1513
      %1879 = vst [vmem:[%s4 + $0x128] sm:$0xff] %v1514
      %1880 = vst [vmem:[%s4 + $0x130] sm:$0xff] %v1515
      %1881 = vst [vmem:[%s4 + $0x138] sm:$0xff] %v1516
      %1882 = vst [vmem:[%s4 + $0x140] sm:$0xff] %v1517
      %1883 = vst [vmem:[%s4 + $0x148] sm:$0xff] %v1518
      %1884 = vst [vmem:[%s4 + $0x150] sm:$0xff] %v1519
      %1885 = vst [vmem:[%s4 + $0x158] sm:$0xff] %v1520
      %1886 = vst [vmem:[%s4 + $0x160] sm:$0xff] %v1521
      %1887 = vst [vmem:[%s4 + $0x168] sm:$0xff] %v1522
      %1888 = vst [vmem:[%s4 + $0x170] sm:$0xff] %v1523
      %1889 = vst [vmem:[%s4 + $0x178] sm:$0xff] %v1524
      %1890 = vst [vmem:[%s5] sm:$0xff] %v1627
      %1891 = vst [vmem:[%s5 + $0x8] sm:$0xff] %v1629
      %1892 = vst [vmem:[%s5 + $0x10] sm:$0xff] %v1632
      %1893 = vst [vmem:[%s5 + $0x18] sm:$0xff] %v1634
      %1894 = vst [vmem:[%s5 + $0x20] sm:$0xff] %v1637
      %1895 = vst [vmem:[%s5 + $0x28] sm:$0xff] %v1639
      %1896 = vst [vmem:[%s5 + $0x30] sm:$0xff] %v1642
      %1897 = vst [vmem:[%s5 + $0x38] sm:$0xff] %v1644
      %1898 = vst [vmem:[%s5 + $0x40] sm:$0xff] %v1647
      %1899 = vst [vmem:[%s5 + $0x48] sm:$0xff] %v1649
      %1900 = vst [vmem:[%s5 + $0x50] sm:$0xff] %v1652
      %1901 = vst [vmem:[%s5 + $0x58] sm:$0xff] %v1654
      %1902 = vst [vmem:[%s5 + $0x60] sm:$0xff] %v1657
      %1903 = vst [vmem:[%s5 + $0x68] sm:$0xff] %v1659
      %1904 = vst [vmem:[%s5 + $0x70] sm:$0xff] %v1662
      %1905 = vst [vmem:[%s5 + $0x78] sm:$0xff] %v1664
      %1906 = vst [vmem:[%s5 + $0x80] sm:$0xff] %v1667
      %1907 = vst [vmem:[%s5 + $0x88] sm:$0xff] %v1669
      %1908 = vst [vmem:[%s5 + $0x90] sm:$0xff] %v1672
      %1909 = vst [vmem:[%s5 + $0x98] sm:$0xff] %v1674
      %1910 = vst [vmem:[%s5 + $0xa0] sm:$0xff] %v1677
      %1911 = vst [vmem:[%s5 + $0xa8] sm:$0xff] %v1679
      %1912 = vst [vmem:[%s5 + $0xb0] sm:$0xff] %v1682
      %1913 = vst [vmem:[%s5 + $0xb8] sm:$0xff] %v1684
      %1914 = vst [vmem:[%s5 + $0xc0] sm:$0xff] %v1687
      %1915 = vst [vmem:[%s5 + $0xc8] sm:$0xff] %v1689
      %1916 = vst [vmem:[%s5 + $0xd0] sm:$0xff] %v1692
      %1917 = vst [vmem:[%s5 + $0xd8] sm:$0xff] %v1694
      %1918 = vst [vmem:[%s5 + $0xe0] sm:$0xff] %v1697
      %1919 = vst [vmem:[%s5 + $0xe8] sm:$0xff] %v1699
      %1920 = vst [vmem:[%s5 + $0xf0] sm:$0xff] %v1702
      %1921 = vst [vmem:[%s5 + $0xf8] sm:$0xff] %v1704
      %1922 = vst [vmem:[%s5 + $0x100] sm:$0xff] %v1707
      %1923 = vst [vmem:[%s5 + $0x108] sm:$0xff] %v1709
      %1924 = vst [vmem:[%s5 + $0x110] sm:$0xff] %v1712
      %1925 = vst [vmem:[%s5 + $0x118] sm:$0xff] %v1714
      %1926 = vst [vmem:[%s5 + $0x120] sm:$0xff] %v1717
      %1927 = vst [vmem:[%s5 + $0x128] sm:$0xff] %v1719
      %1928 = vst [vmem:[%s5 + $0x130] sm:$0xff] %v1722
      %1929 = vst [vmem:[%s5 + $0x138] sm:$0xff] %v1724
      %1930 = vst [vmem:[%s5 + $0x140] sm:$0xff] %v1727
      %1931 = vst [vmem:[%s5 + $0x148] sm:$0xff] %v1729
      %1932 = vst [vmem:[%s5 + $0x150] sm:$0xff] %v1732
      %1933 = vst [vmem:[%s5 + $0x158] sm:$0xff] %v1734
      %1934 = vst [vmem:[%s5 + $0x160] sm:$0xff] %v1737
      %1935 = vst [vmem:[%s5 + $0x168] sm:$0xff] %v1739
      %1936 = vst [vmem:[%s5 + $0x170] sm:$0xff] %v1742
      %1937 = vst [vmem:[%s5 + $0x178] sm:$0xff] %v1744
      // Predicated region
      $region41: #{gcn_forward.3} parent=35 // pred_check
        %p1938 = pneg %p124
      $region42: #{gcn_forward.3} parent=35 // pred_check_branch
        %1940 = sbr.rel (%p1938) target = $region44
      $region43: #{gcn_forward.3} parent=35 // pred_region
        _
      $region44: #{gcn_forward.3} parent=35 // pred_fallthru
        _
      // Predicated region
      $region45: #{gcn_forward.3} parent=35 // pred_check
        %p1941 = pneg %p145
      $region46: #{gcn_forward.3} parent=35 // pred_check_branch
        %1943 = sbr.rel (%p1941) target = $region48
      $region47: #{gcn_forward.3} parent=35 // pred_region
        _
      $region48: #{gcn_forward.3} parent=35 // pred_fallthru
        _
      // Predicated region
      $region49: #{gcn_forward.3} parent=35 // pred_check
        %p1944 = pneg %p124
      $region50: #{gcn_forward.3} parent=35 // pred_check_branch
        %1946 = sbr.rel (%p1944) target = $region52
      $region51: #{gcn_forward.3} parent=35 // pred_region
        _
      $region52: #{gcn_forward.3} parent=35 // pred_fallthru
        _
      // Predicated region
      $region53: #{gcn_forward.3} parent=35 // pred_check
        %p1947 = pneg %p145
      $region54: #{gcn_forward.3} parent=35 // pred_check_branch
        %1949 = sbr.rel (%p1947) target = $region56
      $region55: #{gcn_forward.3} parent=35 // pred_region
        _
      $region56: #{gcn_forward.3} parent=35 // pred_fallthru
        _
    $region36: #{gcn_forward.3} parent=5 // pred_fallthru
      _
    %p1950 = scmp.le.s32.totalorder 2, %s12
    // Predicated region
    $region57: #{gcn_forward.3} parent=5 // pred_check
      %p1951 = pneg %p1950
    $region58: #{gcn_forward.3} parent=5 // pred_check_branch
      %1953 = sbr.rel (%p1951) target = $region60
    $region59: #{gcn_forward.3} parent=5 // pred_region
      %s1954 = ssub.s32 %s12, 2
    $region60: #{gcn_forward.3} parent=5 // pred_fallthru
      _
  $region6: #{gcn_forward.3} parent=0 // loop_footer
    %s16 = sadd.s32 1, %s12
  $region7: #{gcn_forward.3} parent=0 // loop_footer_branch
    %11 = sbr.rel target = $region3
  $region8: #{gcn_forward.3} parent=0 // loop_exit
    _

</llo_original>
